<compile_context>
chip_gen: v5e
topology: v5e:2x2
jax: 0.10.0
libtpu: 0.0.40
codegen_flags: <defaults>
</compile_context>

<pallas_src>
import jax
import jax.numpy as jnp
from jax.experimental import pallas as pl
from jax.experimental.pallas import tpu as pltpu


def _upsample_kernel(wT_ref, b_ref, rep_ref, x_ref, fm_ref, o_ref, conv_ref):
    """One (batch, row-block) grid step.

    wT_ref  : (Ch, C)         folded 1x1-conv weight, transposed (resident)
    b_ref   : (Ch, 1)         folded bias (resident)
    rep_ref : (W, 2W)         0/1 nearest-neighbor width-replication matrix (resident)
    x_ref   : (C, hb*W)       input rows, spatially flattened (lane-dense)
    fm_ref  : (Ch, hb*4W)     skip feature_map rows, (2H,2W)->(H,4W)->flat view
    o_ref   : (C, hb*4W)      fused output block (conv-half || feature_map-half)
    conv_ref: (Ch, hb*W)      VMEM scratch staging the conv result
    """
    Ch = wT_ref.shape[0]
    W, W2 = rep_ref.shape          # W, 2W
    hbW = x_ref.shape[1]
    hb = hbW // W
    cdt = x_ref.dtype

    # Skip-connection passthrough: one big lane-dense store.
    # TODO(synk): this half is a pure memcpy; it could bypass VMEM entirely via
    # a direct HBM->HBM pltpu.make_async_copy with pl.ANY specs.
    o_ref[Ch:, :] = fm_ref[...].astype(o_ref.dtype)

    # Folded 1x1-conv chain over the whole row block: ONE 2-D MXU matmul with
    # N = hb*W lanes, bias added once, result staged in VMEM scratch.
    conv = jnp.dot(wT_ref[...], x_ref[...], preferred_element_type=jnp.float32)
    conv = conv + b_ref[...].astype(jnp.float32)            # (Ch, hb*W)
    conv_ref[...] = conv.astype(cdt)

    rep_mat = rep_ref[...]                                   # (W, 2W)

    # Width replication (tiny 0/1 matmul on the idle MXU) + row duplication,
    # store-side only.  Per-iteration work is small and independent.
    for r in range(hb):                                      # static row loop
        seg = conv_ref[:, r * W:(r + 1) * W]                 # (Ch, W)
        row = jnp.dot(seg, rep_mat,
                      preferred_element_type=jnp.float32).astype(o_ref.dtype)  # (Ch, 2W)
        base = r * 4 * W
        # One 4W-wide flat row == output rows 2h and 2h+1 (nearest-neighbor in H).
        o_ref[:Ch, base:base + W2] = row
        o_ref[:Ch, base + W2:base + 2 * W2] = row


def _vmem_limit_bytes():
    """Generation-aware VMEM limit: ~3/4 of physical, capped at 96 MiB."""
    try:
        cap = int(pltpu.get_tpu_info().vmem_capacity_bytes)
    except Exception:
        cap = 64 * 1024 * 1024   # conservative fallback (v7x per-core VMEM)
    return max(32 * 1024 * 1024, min(3 * cap // 4, 96 * 1024 * 1024))


def _block_vmem_bytes(hb, C, Ch, W, itemsize):
    """Padded VMEM footprint of one grid step (double-buffered blocks + scratch)."""
    lane = lambda d: -(-d // 128) * 128
    sub = lambda d: -(-d // 8) * 8
    x_blk = sub(C) * lane(hb * W) * itemsize
    fm_blk = sub(Ch) * lane(hb * 4 * W) * itemsize
    out_blk = sub(C) * lane(hb * 4 * W) * itemsize
    conv_scr = sub(Ch) * lane(hb * W) * itemsize          # staged conv (model dtype)
    conv_f32 = sub(Ch) * lane(hb * W) * 4                 # f32 matmul result temp
    weights = (sub(Ch) * lane(C) + sub(Ch) * lane(1) + sub(W) * lane(2 * W)) * itemsize
    return 2 * (x_blk + fm_blk + out_blk) + conv_scr + conv_f32 + 2 * weights


def _pick_row_block(H, W, C, Ch, itemsize, n_batch, budget):
    """Largest row block that (a) divides H, (b) keeps blocks lane-dense,
    (c) fits the VMEM budget, and (d) leaves >= 2 parallel grid steps
    (so both v7x TensorCores get work).  hb multiples of 16 preferred
    (bf16 sublane packing); 8 only as a fallback."""
    cands = [hb for hb in (64, 32, 16) if hb <= H] + [8]
    for need_two_steps in (True, False):
        for hb in cands:
            if H % hb:
                continue
            if hb != H and (hb * W) % 128:
                continue   # (8,128) BlockSpec rule / lane-dense requirement
            if need_two_steps and n_batch * (H // hb) < 2:
                continue
            if _block_vmem_bytes(hb, C, Ch, W, itemsize) <= budget:
                return hb
    return H  # small / odd H: whole image height as one block (full-dim blocks)


def upsample_forward(x, feature_map, params):
    """
    x:           (N, C, H, W)        NCHW (PyTorch convention)
    feature_map: (N, C//2, 2H, 2W)   NCHW
    returns:     (N, C, 2H, 2W)      NCHW (concat of conv(upsample(x)) and feature_map)
    """
    w1, b1, w2, b2 = params  # w1: (C, C/2), b1: (C/2,), w2: (C/2, C/2), b2: (C/2,)
    N, C, H, W = x.shape
    Ch = C // 2
    assert C % 2 == 0
    assert feature_map.shape == (N, Ch, 2 * H, 2 * W)

    # Fold the two 1x1 convs (exact identity: no nonlinearity between them).
    # TODO(synk): for training keep w1/w2 separate and fold per-step.
    wT = (w1 @ w2).T                        # (Ch, C)
    bf = (b1 @ w2 + b2).reshape(Ch, 1)      # (Ch, 1)

    # Hoisted 0/1 width-replication matrix: R[w, j] = (j // 2 == w).
    rep_mat = (jnp.arange(2 * W)[None, :] // 2 == jnp.arange(W)[:, None]).astype(x.dtype)

    # Free row-major views (lane-dense blocks for every operand):
    #   x  (N,C,H,W)      -> (N, C, H*W)
    #   fm (N,Ch,2H,2W)   -> (N, Ch, H*4W)   (row pair [2h,2h+1] = one 4W row)
    #   out                  (N, C, H*4W)   -> reshaped back to (N,C,2H,2W)
    x_f = x.reshape(N, C, H * W)
    fm_f = feature_map.reshape(N, Ch, H * 4 * W)

    vmem_limit = _vmem_limit_bytes()
    hb = _pick_row_block(H, W, C, Ch, x.dtype.itemsize, N,
                         budget=vmem_limit - 4 * 1024 * 1024)
    grid = (N, H // hb)

    flops = 2 * N * H * W * C * Ch + 4 * N * H * W * W * Ch
    bytes_accessed = (x.size + feature_map.size + N * C * 4 * H * W
                      + wT.size + bf.size + rep_mat.size) * x.dtype.itemsize

    out_f = pl.pallas_call(
        _upsample_kernel,
        out_shape=jax.ShapeDtypeStruct((N, C, H * 4 * W), x.dtype),
        grid_spec=pltpu.PrefetchScalarGridSpec(
            num_scalar_prefetch=0,
            grid=grid,
            in_specs=[
                pl.BlockSpec((Ch, C), lambda n, j: (0, 0)),                  # folded weight
                pl.BlockSpec((Ch, 1), lambda n, j: (0, 0)),                  # folded bias
                pl.BlockSpec((W, 2 * W), lambda n, j: (0, 0)),               # rep matrix
                pl.BlockSpec((None, C, hb * W), lambda n, j: (n, 0, j)),     # x (flat)
                pl.BlockSpec((None, Ch, hb * 4 * W), lambda n, j: (n, 0, j)),  # fm (flat)
            ],
            out_specs=pl.BlockSpec((None, C, hb * 4 * W), lambda n, j: (n, 0, j)),
            scratch_shapes=[pltpu.VMEM((Ch, hb * W), x.dtype)],
        ),
        compiler_params=pltpu.CompilerParams(
            dimension_semantics=("parallel", "parallel"),
            vmem_limit_bytes=int(vmem_limit),
        ),
        cost_estimate=pl.CostEstimate(
            flops=int(flops), transcendentals=0, bytes_accessed=int(bytes_accessed)),
    )(wT, bf, rep_mat, x_f, fm_f)

    # Free reshape back to the PyTorch NCHW output layout.
    return out_f.reshape(N, C, 2 * H, 2 * W)


def init_params(key, channel, dtype=jnp.float32):
    """Synthetic init matching Conv2d(channel, channel//2, 1, 1) x2.

    PyTorch conv weight is (out, in, 1, 1); stored here as the equivalent
    matmul matrix with shape (in, out) = conv_w[:, :, 0, 0].T.
    """
    ch = channel // 2
    k1, k2, k3, k4 = jax.random.split(key, 4)
    w1 = jax.random.normal(k1, (channel, ch), dtype) * 0.1
    b1 = jax.random.normal(k2, (ch,), dtype) * 0.1
    w2 = jax.random.normal(k3, (ch, ch), dtype) * 0.1
    b2 = jax.random.normal(k4, (ch,), dtype) * 0.1
    return (w1, b1, w2, b2)


def _reference(x, feature_map, params):
    """Pure-JAX reference (mirrors the PyTorch module op-by-op)."""
    w1, b1, w2, b2 = params
    up = jnp.repeat(jnp.repeat(x, 2, axis=2), 2, axis=3)
    up_nhwc = jnp.transpose(up, (0, 2, 3, 1))
    h = up_nhwc @ w1 + b1
    o = h @ w2 + b2
    o = jnp.transpose(o, (0, 3, 1, 2))
    return jnp.concatenate((o, feature_map), axis=1)


if __name__ == "__main__":
    key = jax.random.PRNGKey(0)
    kx, kf, kp = jax.random.split(key, 3)

    N, C, H, W = 2, 4, 16, 16            # channel = 4 -> channel//2 = 2
    x = jax.random.normal(kx, (N, C, H, W), jnp.float32)
    feature_map = jax.random.normal(kf, (N, C // 2, 2 * H, 2 * W), jnp.float32)
    params = init_params(kp, C)

    fwd = jax.jit(upsample_forward)
    out = fwd(x, feature_map, params)
    out = jax.block_until_ready(out)

    ref = _reference(x, feature_map, params)
    assert out.shape == (N, C, 2 * H, 2 * W), out.shape
    assert jnp.allclose(out, ref, atol=1e-4, rtol=1e-4), "mismatch vs reference"

    print("KERNEL_OK")
</pallas_src>

<mosaic_0001>
module attributes {stable_mosaic.version = 11 : i64} {
  func.func @_upsample_kernel(%arg0: i32, %arg1: i32, %arg2: memref<2x4xf32, #tpu.memory_space<vmem>>, %arg3: memref<2x1xf32, #tpu.memory_space<vmem>>, %arg4: memref<16x32xf32, #tpu.memory_space<vmem>>, %arg5: memref<1x4x256xf32, #tpu.memory_space<vmem>>, %arg6: memref<1x2x1024xf32, #tpu.memory_space<vmem>>, %arg7: memref<1x4x1024xf32, #tpu.memory_space<vmem>>, %arg8: memref<2x256xf32, #tpu.memory_space<vmem>>) attributes {dimension_semantics = [#tpu.dimension_semantics<parallel>, #tpu.dimension_semantics<parallel>], iteration_bounds = array<i64: 2, 1>, scalar_prefetch = 0 : i64, scratch_operands = 1 : i64, tpu.core_type = #tpu.core_type<tc>, window_params = [{pipeline_mode = #tpu.pipeline_mode<synchronous>, transform_indices = @transform_0, window_bounds = array<i64: 2, 4>}, {pipeline_mode = #tpu.pipeline_mode<synchronous>, transform_indices = @transform_1, window_bounds = array<i64: 2, 1>}, {pipeline_mode = #tpu.pipeline_mode<synchronous>, transform_indices = @transform_2, window_bounds = array<i64: 16, 32>}, {transform_indices = @transform_3, window_bounds = array<i64: 1, 4, 256>}, {transform_indices = @transform_4, window_bounds = array<i64: 1, 2, 1024>}, {transform_indices = @transform_5, window_bounds = array<i64: 1, 4, 1024>}]} {
    %c0 = arith.constant 0 : index
    %c0_0 = arith.constant 0 : index
    %c0_1 = arith.constant 0 : index
    %0 = vector.load %arg6[%c0, %c0_0, %c0_1] : memref<1x2x1024xf32, #tpu.memory_space<vmem>>, vector<1x2x1024xf32>
    %1 = vector.shape_cast %0 : vector<1x2x1024xf32> to vector<2x1024xf32>
    %c0_2 = arith.constant 0 : index
    %c2 = arith.constant 2 : index
    %c0_3 = arith.constant 0 : index
    %2 = vector.load %arg7[%c0_2, %c2, %c0_3] : memref<1x4x1024xf32, #tpu.memory_space<vmem>>, vector<1x2x1024xf32>
    %3 = vector.shape_cast %2 : vector<1x2x1024xf32> to vector<2x1024xf32>
    %4 = vector.shape_cast %1 : vector<2x1024xf32> to vector<1x2x1024xf32>
    tpu.vector_store %arg7[%c0_2, %c2, %c0_3], %4 {strides = array<i32>} : memref<1x4x1024xf32, #tpu.memory_space<vmem>>, vector<1x2x1024xf32>,
    %c0_4 = arith.constant 0 : index
    %c0_5 = arith.constant 0 : index
    %5 = vector.load %arg2[%c0_4, %c0_5] : memref<2x4xf32, #tpu.memory_space<vmem>>, vector<2x4xf32>
    %c0_6 = arith.constant 0 : index
    %c0_7 = arith.constant 0 : index
    %c0_8 = arith.constant 0 : index
    %6 = vector.load %arg5[%c0_6, %c0_7, %c0_8] : memref<1x4x256xf32, #tpu.memory_space<vmem>>, vector<1x4x256xf32>
    %7 = vector.shape_cast %6 : vector<1x4x256xf32> to vector<4x256xf32>
    %cst = arith.constant dense<0.000000e+00> : vector<2x256xf32>
    %8 = tpu.matmul %5, %7, %cst {dimension_numbers = #tpu.dot_dimension_numbers<[1], [0], [0], [1], [0, 0, 1, 1], [], []>} : vector<2x4xf32>, vector<4x256xf32>, vector<2x256xf32> -> vector<2x256xf32>
    %c0_9 = arith.constant 0 : index
    %c0_10 = arith.constant 0 : index
    %9 = vector.load %arg3[%c0_9, %c0_10] : memref<2x1xf32, #tpu.memory_space<vmem>>, vector<2x1xf32>
    %10 = vector.broadcast %9 : vector<2x1xf32> to vector<2x256xf32>
    %11 = arith.addf %8, %10 : vector<2x256xf32>
    %c0_11 = arith.constant 0 : index
    %c0_12 = arith.constant 0 : index
    %12 = vector.load %arg8[%c0_11, %c0_12] : memref<2x256xf32, #tpu.memory_space<vmem>>, vector<2x256xf32>
    tpu.vector_store %arg8[%c0_11, %c0_12], %11 {strides = array<i32>} : memref<2x256xf32, #tpu.memory_space<vmem>>, vector<2x256xf32>,
    %c0_13 = arith.constant 0 : index
    %c0_14 = arith.constant 0 : index
    %13 = vector.load %arg4[%c0_13, %c0_14] : memref<16x32xf32, #tpu.memory_space<vmem>>, vector<16x32xf32>
    %c0_15 = arith.constant 0 : index
    %c0_16 = arith.constant 0 : index
    %14 = vector.load %arg8[%c0_15, %c0_16] : memref<2x256xf32, #tpu.memory_space<vmem>>, vector<2x16xf32>
    %cst_17 = arith.constant dense<0.000000e+00> : vector<2x32xf32>
    %15 = tpu.matmul %14, %13, %cst_17 {dimension_numbers = #tpu.dot_dimension_numbers<[1], [0], [0], [1], [0, 0, 1, 1], [], []>} : vector<2x16xf32>, vector<16x32xf32>, vector<2x32xf32> -> vector<2x32xf32>
    %c0_18 = arith.constant 0 : index
    %c0_19 = arith.constant 0 : index
    %c0_20 = arith.constant 0 : index
    %16 = vector.load %arg7[%c0_18, %c0_19, %c0_20] : memref<1x4x1024xf32, #tpu.memory_space<vmem>>, vector<1x2x32xf32>
    %17 = vector.shape_cast %16 : vector<1x2x32xf32> to vector<2x32xf32>
    %18 = vector.shape_cast %15 : vector<2x32xf32> to vector<1x2x32xf32>
    tpu.vector_store %arg7[%c0_18, %c0_19, %c0_20], %18 {strides = array<i32>} : memref<1x4x1024xf32, #tpu.memory_space<vmem>>, vector<1x2x32xf32>,
    %c0_21 = arith.constant 0 : index
    %c0_22 = arith.constant 0 : index
    %c32 = arith.constant 32 : index
    %19 = vector.load %arg7[%c0_21, %c0_22, %c32] : memref<1x4x1024xf32, #tpu.memory_space<vmem>>, vector<1x2x32xf32>
    %20 = vector.shape_cast %19 : vector<1x2x32xf32> to vector<2x32xf32>
    %21 = vector.shape_cast %15 : vector<2x32xf32> to vector<1x2x32xf32>
    tpu.vector_store %arg7[%c0_21, %c0_22, %c32], %21 {strides = array<i32>} : memref<1x4x1024xf32, #tpu.memory_space<vmem>>, vector<1x2x32xf32>,
    %c0_23 = arith.constant 0 : index
    %c16 = arith.constant 16 : index
    %22 = vector.load %arg8[%c0_23, %c16] : memref<2x256xf32, #tpu.memory_space<vmem>>, vector<2x16xf32>
    %cst_24 = arith.constant dense<0.000000e+00> : vector<2x32xf32>
    %23 = tpu.matmul %22, %13, %cst_24 {dimension_numbers = #tpu.dot_dimension_numbers<[1], [0], [0], [1], [0, 0, 1, 1], [], []>} : vector<2x16xf32>, vector<16x32xf32>, vector<2x32xf32> -> vector<2x32xf32>
    %c0_25 = arith.constant 0 : index
    %c0_26 = arith.constant 0 : index
    %c64 = arith.constant 64 : index
    %24 = vector.load %arg7[%c0_25, %c0_26, %c64] : memref<1x4x1024xf32, #tpu.memory_space<vmem>>, vector<1x2x32xf32>
    %25 = vector.shape_cast %24 : vector<1x2x32xf32> to vector<2x32xf32>
    %26 = vector.shape_cast %23 : vector<2x32xf32> to vector<1x2x32xf32>
    tpu.vector_store %arg7[%c0_25, %c0_26, %c64], %26 {strides = array<i32>} : memref<1x4x1024xf32, #tpu.memory_space<vmem>>, vector<1x2x32xf32>,
    %c0_27 = arith.constant 0 : index
    %c0_28 = arith.constant 0 : index
    %c96 = arith.constant 96 : index
    %27 = vector.load %arg7[%c0_27, %c0_28, %c96] : memref<1x4x1024xf32, #tpu.memory_space<vmem>>, vector<1x2x32xf32>
    %28 = vector.shape_cast %27 : vector<1x2x32xf32> to vector<2x32xf32>
    %29 = vector.shape_cast %23 : vector<2x32xf32> to vector<1x2x32xf32>
    tpu.vector_store %arg7[%c0_27, %c0_28, %c96], %29 {strides = array<i32>} : memref<1x4x1024xf32, #tpu.memory_space<vmem>>, vector<1x2x32xf32>,
    %c0_29 = arith.constant 0 : index
    %c32_30 = arith.constant 32 : index
    %30 = vector.load %arg8[%c0_29, %c32_30] : memref<2x256xf32, #tpu.memory_space<vmem>>, vector<2x16xf32>
    %cst_31 = arith.constant dense<0.000000e+00> : vector<2x32xf32>
    %31 = tpu.matmul %30, %13, %cst_31 {dimension_numbers = #tpu.dot_dimension_numbers<[1], [0], [0], [1], [0, 0, 1, 1], [], []>} : vector<2x16xf32>, vector<16x32xf32>, vector<2x32xf32> -> vector<2x32xf32>
    %c0_32 = arith.constant 0 : index
    %c0_33 = arith.constant 0 : index
    %c128 = arith.constant 128 : index
    %32 = vector.load %arg7[%c0_32, %c0_33, %c128] : memref<1x4x1024xf32, #tpu.memory_space<vmem>>, vector<1x2x32xf32>
    %33 = vector.shape_cast %32 : vector<1x2x32xf32> to vector<2x32xf32>
    %34 = vector.shape_cast %31 : vector<2x32xf32> to vector<1x2x32xf32>
    tpu.vector_store %arg7[%c0_32, %c0_33, %c128], %34 {strides = array<i32>} : memref<1x4x1024xf32, #tpu.memory_space<vmem>>, vector<1x2x32xf32>,
    %c0_34 = arith.constant 0 : index
    %c0_35 = arith.constant 0 : index
    %c160 = arith.constant 160 : index
    %35 = vector.load %arg7[%c0_34, %c0_35, %c160] : memref<1x4x1024xf32, #tpu.memory_space<vmem>>, vector<1x2x32xf32>
    %36 = vector.shape_cast %35 : vector<1x2x32xf32> to vector<2x32xf32>
    %37 = vector.shape_cast %31 : vector<2x32xf32> to vector<1x2x32xf32>
    tpu.vector_store %arg7[%c0_34, %c0_35, %c160], %37 {strides = array<i32>} : memref<1x4x1024xf32, #tpu.memory_space<vmem>>, vector<1x2x32xf32>,
    %c0_36 = arith.constant 0 : index
    %c48 = arith.constant 48 : index
    %38 = vector.load %arg8[%c0_36, %c48] : memref<2x256xf32, #tpu.memory_space<vmem>>, vector<2x16xf32>
    %cst_37 = arith.constant dense<0.000000e+00> : vector<2x32xf32>
    %39 = tpu.matmul %38, %13, %cst_37 {dimension_numbers = #tpu.dot_dimension_numbers<[1], [0], [0], [1], [0, 0, 1, 1], [], []>} : vector<2x16xf32>, vector<16x32xf32>, vector<2x32xf32> -> vector<2x32xf32>
    %c0_38 = arith.constant 0 : index
    %c0_39 = arith.constant 0 : index
    %c192 = arith.constant 192 : index
    %40 = vector.load %arg7[%c0_38, %c0_39, %c192] : memref<1x4x1024xf32, #tpu.memory_space<vmem>>, vector<1x2x32xf32>
    %41 = vector.shape_cast %40 : vector<1x2x32xf32> to vector<2x32xf32>
    %42 = vector.shape_cast %39 : vector<2x32xf32> to vector<1x2x32xf32>
    tpu.vector_store %arg7[%c0_38, %c0_39, %c192], %42 {strides = array<i32>} : memref<1x4x1024xf32, #tpu.memory_space<vmem>>, vector<1x2x32xf32>,
    %c0_40 = arith.constant 0 : index
    %c0_41 = arith.constant 0 : index
    %c224 = arith.constant 224 : index
    %43 = vector.load %arg7[%c0_40, %c0_41, %c224] : memref<1x4x1024xf32, #tpu.memory_space<vmem>>, vector<1x2x32xf32>
    %44 = vector.shape_cast %43 : vector<1x2x32xf32> to vector<2x32xf32>
    %45 = vector.shape_cast %39 : vector<2x32xf32> to vector<1x2x32xf32>
    tpu.vector_store %arg7[%c0_40, %c0_41, %c224], %45 {strides = array<i32>} : memref<1x4x1024xf32, #tpu.memory_space<vmem>>, vector<1x2x32xf32>,
    %c0_42 = arith.constant 0 : index
    %c64_43 = arith.constant 64 : index
    %46 = vector.load %arg8[%c0_42, %c64_43] : memref<2x256xf32, #tpu.memory_space<vmem>>, vector<2x16xf32>
    %cst_44 = arith.constant dense<0.000000e+00> : vector<2x32xf32>
    %47 = tpu.matmul %46, %13, %cst_44 {dimension_numbers = #tpu.dot_dimension_numbers<[1], [0], [0], [1], [0, 0, 1, 1], [], []>} : vector<2x16xf32>, vector<16x32xf32>, vector<2x32xf32> -> vector<2x32xf32>
    %c0_45 = arith.constant 0 : index
    %c0_46 = arith.constant 0 : index
    %c256 = arith.constant 256 : index
    %48 = vector.load %arg7[%c0_45, %c0_46, %c256] : memref<1x4x1024xf32, #tpu.memory_space<vmem>>, vector<1x2x32xf32>
    %49 = vector.shape_cast %48 : vector<1x2x32xf32> to vector<2x32xf32>
    %50 = vector.shape_cast %47 : vector<2x32xf32> to vector<1x2x32xf32>
    tpu.vector_store %arg7[%c0_45, %c0_46, %c256], %50 {strides = array<i32>} : memref<1x4x1024xf32, #tpu.memory_space<vmem>>, vector<1x2x32xf32>,
    %c0_47 = arith.constant 0 : index
    %c0_48 = arith.constant 0 : index
    %c288 = arith.constant 288 : index
    %51 = vector.load %arg7[%c0_47, %c0_48, %c288] : memref<1x4x1024xf32, #tpu.memory_space<vmem>>, vector<1x2x32xf32>
    %52 = vector.shape_cast %51 : vector<1x2x32xf32> to vector<2x32xf32>
    %53 = vector.shape_cast %47 : vector<2x32xf32> to vector<1x2x32xf32>
    tpu.vector_store %arg7[%c0_47, %c0_48, %c288], %53 {strides = array<i32>} : memref<1x4x1024xf32, #tpu.memory_space<vmem>>, vector<1x2x32xf32>,
    %c0_49 = arith.constant 0 : index
    %c80 = arith.constant 80 : index
    %54 = vector.load %arg8[%c0_49, %c80] : memref<2x256xf32, #tpu.memory_space<vmem>>, vector<2x16xf32>
    %cst_50 = arith.constant dense<0.000000e+00> : vector<2x32xf32>
    %55 = tpu.matmul %54, %13, %cst_50 {dimension_numbers = #tpu.dot_dimension_numbers<[1], [0], [0], [1], [0, 0, 1, 1], [], []>} : vector<2x16xf32>, vector<16x32xf32>, vector<2x32xf32> -> vector<2x32xf32>
    %c0_51 = arith.constant 0 : index
    %c0_52 = arith.constant 0 : index
    %c320 = arith.constant 320 : index
    %56 = vector.load %arg7[%c0_51, %c0_52, %c320] : memref<1x4x1024xf32, #tpu.memory_space<vmem>>, vector<1x2x32xf32>
    %57 = vector.shape_cast %56 : vector<1x2x32xf32> to vector<2x32xf32>
    %58 = vector.shape_cast %55 : vector<2x32xf32> to vector<1x2x32xf32>
    tpu.vector_store %arg7[%c0_51, %c0_52, %c320], %58 {strides = array<i32>} : memref<1x4x1024xf32, #tpu.memory_space<vmem>>, vector<1x2x32xf32>,
    %c0_53 = arith.constant 0 : index
    %c0_54 = arith.constant 0 : index
    %c352 = arith.constant 352 : index
    %59 = vector.load %arg7[%c0_53, %c0_54, %c352] : memref<1x4x1024xf32, #tpu.memory_space<vmem>>, vector<1x2x32xf32>
    %60 = vector.shape_cast %59 : vector<1x2x32xf32> to vector<2x32xf32>
    %61 = vector.shape_cast %55 : vector<2x32xf32> to vector<1x2x32xf32>
    tpu.vector_store %arg7[%c0_53, %c0_54, %c352], %61 {strides = array<i32>} : memref<1x4x1024xf32, #tpu.memory_space<vmem>>, vector<1x2x32xf32>,
    %c0_55 = arith.constant 0 : index
    %c96_56 = arith.constant 96 : index
    %62 = vector.load %arg8[%c0_55, %c96_56] : memref<2x256xf32, #tpu.memory_space<vmem>>, vector<2x16xf32>
    %cst_57 = arith.constant dense<0.000000e+00> : vector<2x32xf32>
    %63 = tpu.matmul %62, %13, %cst_57 {dimension_numbers = #tpu.dot_dimension_numbers<[1], [0], [0], [1], [0, 0, 1, 1], [], []>} : vector<2x16xf32>, vector<16x32xf32>, vector<2x32xf32> -> vector<2x32xf32>
    %c0_58 = arith.constant 0 : index
    %c0_59 = arith.constant 0 : index
    %c384 = arith.constant 384 : index
    %64 = vector.load %arg7[%c0_58, %c0_59, %c384] : memref<1x4x1024xf32, #tpu.memory_space<vmem>>, vector<1x2x32xf32>
    %65 = vector.shape_cast %64 : vector<1x2x32xf32> to vector<2x32xf32>
    %66 = vector.shape_cast %63 : vector<2x32xf32> to vector<1x2x32xf32>
    tpu.vector_store %arg7[%c0_58, %c0_59, %c384], %66 {strides = array<i32>} : memref<1x4x1024xf32, #tpu.memory_space<vmem>>, vector<1x2x32xf32>,
    %c0_60 = arith.constant 0 : index
    %c0_61 = arith.constant 0 : index
    %c416 = arith.constant 416 : index
    %67 = vector.load %arg7[%c0_60, %c0_61, %c416] : memref<1x4x1024xf32, #tpu.memory_space<vmem>>, vector<1x2x32xf32>
    %68 = vector.shape_cast %67 : vector<1x2x32xf32> to vector<2x32xf32>
    %69 = vector.shape_cast %63 : vector<2x32xf32> to vector<1x2x32xf32>
    tpu.vector_store %arg7[%c0_60, %c0_61, %c416], %69 {strides = array<i32>} : memref<1x4x1024xf32, #tpu.memory_space<vmem>>, vector<1x2x32xf32>,
    %c0_62 = arith.constant 0 : index
    %c112 = arith.constant 112 : index
    %70 = vector.load %arg8[%c0_62, %c112] : memref<2x256xf32, #tpu.memory_space<vmem>>, vector<2x16xf32>
    %cst_63 = arith.constant dense<0.000000e+00> : vector<2x32xf32>
    %71 = tpu.matmul %70, %13, %cst_63 {dimension_numbers = #tpu.dot_dimension_numbers<[1], [0], [0], [1], [0, 0, 1, 1], [], []>} : vector<2x16xf32>, vector<16x32xf32>, vector<2x32xf32> -> vector<2x32xf32>
    %c0_64 = arith.constant 0 : index
    %c0_65 = arith.constant 0 : index
    %c448 = arith.constant 448 : index
    %72 = vector.load %arg7[%c0_64, %c0_65, %c448] : memref<1x4x1024xf32, #tpu.memory_space<vmem>>, vector<1x2x32xf32>
    %73 = vector.shape_cast %72 : vector<1x2x32xf32> to vector<2x32xf32>
    %74 = vector.shape_cast %71 : vector<2x32xf32> to vector<1x2x32xf32>
    tpu.vector_store %arg7[%c0_64, %c0_65, %c448], %74 {strides = array<i32>} : memref<1x4x1024xf32, #tpu.memory_space<vmem>>, vector<1x2x32xf32>,
    %c0_66 = arith.constant 0 : index
    %c0_67 = arith.constant 0 : index
    %c480 = arith.constant 480 : index
    %75 = vector.load %arg7[%c0_66, %c0_67, %c480] : memref<1x4x1024xf32, #tpu.memory_space<vmem>>, vector<1x2x32xf32>
    %76 = vector.shape_cast %75 : vector<1x2x32xf32> to vector<2x32xf32>
    %77 = vector.shape_cast %71 : vector<2x32xf32> to vector<1x2x32xf32>
    tpu.vector_store %arg7[%c0_66, %c0_67, %c480], %77 {strides = array<i32>} : memref<1x4x1024xf32, #tpu.memory_space<vmem>>, vector<1x2x32xf32>,
    %c0_68 = arith.constant 0 : index
    %c128_69 = arith.constant 128 : index
    %78 = vector.load %arg8[%c0_68, %c128_69] : memref<2x256xf32, #tpu.memory_space<vmem>>, vector<2x16xf32>
    %cst_70 = arith.constant dense<0.000000e+00> : vector<2x32xf32>
    %79 = tpu.matmul %78, %13, %cst_70 {dimension_numbers = #tpu.dot_dimension_numbers<[1], [0], [0], [1], [0, 0, 1, 1], [], []>} : vector<2x16xf32>, vector<16x32xf32>, vector<2x32xf32> -> vector<2x32xf32>
    %c0_71 = arith.constant 0 : index
    %c0_72 = arith.constant 0 : index
    %c512 = arith.constant 512 : index
    %80 = vector.load %arg7[%c0_71, %c0_72, %c512] : memref<1x4x1024xf32, #tpu.memory_space<vmem>>, vector<1x2x32xf32>
    %81 = vector.shape_cast %80 : vector<1x2x32xf32> to vector<2x32xf32>
    %82 = vector.shape_cast %79 : vector<2x32xf32> to vector<1x2x32xf32>
    tpu.vector_store %arg7[%c0_71, %c0_72, %c512], %82 {strides = array<i32>} : memref<1x4x1024xf32, #tpu.memory_space<vmem>>, vector<1x2x32xf32>,
    %c0_73 = arith.constant 0 : index
    %c0_74 = arith.constant 0 : index
    %c544 = arith.constant 544 : index
    %83 = vector.load %arg7[%c0_73, %c0_74, %c544] : memref<1x4x1024xf32, #tpu.memory_space<vmem>>, vector<1x2x32xf32>
    %84 = vector.shape_cast %83 : vector<1x2x32xf32> to vector<2x32xf32>
    %85 = vector.shape_cast %79 : vector<2x32xf32> to vector<1x2x32xf32>
    tpu.vector_store %arg7[%c0_73, %c0_74, %c544], %85 {strides = array<i32>} : memref<1x4x1024xf32, #tpu.memory_space<vmem>>, vector<1x2x32xf32>,
    %c0_75 = arith.constant 0 : index
    %c144 = arith.constant 144 : index
    %86 = vector.load %arg8[%c0_75, %c144] : memref<2x256xf32, #tpu.memory_space<vmem>>, vector<2x16xf32>
    %cst_76 = arith.constant dense<0.000000e+00> : vector<2x32xf32>
    %87 = tpu.matmul %86, %13, %cst_76 {dimension_numbers = #tpu.dot_dimension_numbers<[1], [0], [0], [1], [0, 0, 1, 1], [], []>} : vector<2x16xf32>, vector<16x32xf32>, vector<2x32xf32> -> vector<2x32xf32>
    %c0_77 = arith.constant 0 : index
    %c0_78 = arith.constant 0 : index
    %c576 = arith.constant 576 : index
    %88 = vector.load %arg7[%c0_77, %c0_78, %c576] : memref<1x4x1024xf32, #tpu.memory_space<vmem>>, vector<1x2x32xf32>
    %89 = vector.shape_cast %88 : vector<1x2x32xf32> to vector<2x32xf32>
    %90 = vector.shape_cast %87 : vector<2x32xf32> to vector<1x2x32xf32>
    tpu.vector_store %arg7[%c0_77, %c0_78, %c576], %90 {strides = array<i32>} : memref<1x4x1024xf32, #tpu.memory_space<vmem>>, vector<1x2x32xf32>,
    %c0_79 = arith.constant 0 : index
    %c0_80 = arith.constant 0 : index
    %c608 = arith.constant 608 : index
    %91 = vector.load %arg7[%c0_79, %c0_80, %c608] : memref<1x4x1024xf32, #tpu.memory_space<vmem>>, vector<1x2x32xf32>
    %92 = vector.shape_cast %91 : vector<1x2x32xf32> to vector<2x32xf32>
    %93 = vector.shape_cast %87 : vector<2x32xf32> to vector<1x2x32xf32>
    tpu.vector_store %arg7[%c0_79, %c0_80, %c608], %93 {strides = array<i32>} : memref<1x4x1024xf32, #tpu.memory_space<vmem>>, vector<1x2x32xf32>,
    %c0_81 = arith.constant 0 : index
    %c160_82 = arith.constant 160 : index
    %94 = vector.load %arg8[%c0_81, %c160_82] : memref<2x256xf32, #tpu.memory_space<vmem>>, vector<2x16xf32>
    %cst_83 = arith.constant dense<0.000000e+00> : vector<2x32xf32>
    %95 = tpu.matmul %94, %13, %cst_83 {dimension_numbers = #tpu.dot_dimension_numbers<[1], [0], [0], [1], [0, 0, 1, 1], [], []>} : vector<2x16xf32>, vector<16x32xf32>, vector<2x32xf32> -> vector<2x32xf32>
    %c0_84 = arith.constant 0 : index
    %c0_85 = arith.constant 0 : index
    %c640 = arith.constant 640 : index
    %96 = vector.load %arg7[%c0_84, %c0_85, %c640] : memref<1x4x1024xf32, #tpu.memory_space<vmem>>, vector<1x2x32xf32>
    %97 = vector.shape_cast %96 : vector<1x2x32xf32> to vector<2x32xf32>
    %98 = vector.shape_cast %95 : vector<2x32xf32> to vector<1x2x32xf32>
    tpu.vector_store %arg7[%c0_84, %c0_85, %c640], %98 {strides = array<i32>} : memref<1x4x1024xf32, #tpu.memory_space<vmem>>, vector<1x2x32xf32>,
    %c0_86 = arith.constant 0 : index
    %c0_87 = arith.constant 0 : index
    %c672 = arith.constant 672 : index
    %99 = vector.load %arg7[%c0_86, %c0_87, %c672] : memref<1x4x1024xf32, #tpu.memory_space<vmem>>, vector<1x2x32xf32>
    %100 = vector.shape_cast %99 : vector<1x2x32xf32> to vector<2x32xf32>
    %101 = vector.shape_cast %95 : vector<2x32xf32> to vector<1x2x32xf32>
    tpu.vector_store %arg7[%c0_86, %c0_87, %c672], %101 {strides = array<i32>} : memref<1x4x1024xf32, #tpu.memory_space<vmem>>, vector<1x2x32xf32>,
    %c0_88 = arith.constant 0 : index
    %c176 = arith.constant 176 : index
    %102 = vector.load %arg8[%c0_88, %c176] : memref<2x256xf32, #tpu.memory_space<vmem>>, vector<2x16xf32>
    %cst_89 = arith.constant dense<0.000000e+00> : vector<2x32xf32>
    %103 = tpu.matmul %102, %13, %cst_89 {dimension_numbers = #tpu.dot_dimension_numbers<[1], [0], [0], [1], [0, 0, 1, 1], [], []>} : vector<2x16xf32>, vector<16x32xf32>, vector<2x32xf32> -> vector<2x32xf32>
    %c0_90 = arith.constant 0 : index
    %c0_91 = arith.constant 0 : index
    %c704 = arith.constant 704 : index
    %104 = vector.load %arg7[%c0_90, %c0_91, %c704] : memref<1x4x1024xf32, #tpu.memory_space<vmem>>, vector<1x2x32xf32>
    %105 = vector.shape_cast %104 : vector<1x2x32xf32> to vector<2x32xf32>
    %106 = vector.shape_cast %103 : vector<2x32xf32> to vector<1x2x32xf32>
    tpu.vector_store %arg7[%c0_90, %c0_91, %c704], %106 {strides = array<i32>} : memref<1x4x1024xf32, #tpu.memory_space<vmem>>, vector<1x2x32xf32>,
    %c0_92 = arith.constant 0 : index
    %c0_93 = arith.constant 0 : index
    %c736 = arith.constant 736 : index
    %107 = vector.load %arg7[%c0_92, %c0_93, %c736] : memref<1x4x1024xf32, #tpu.memory_space<vmem>>, vector<1x2x32xf32>
    %108 = vector.shape_cast %107 : vector<1x2x32xf32> to vector<2x32xf32>
    %109 = vector.shape_cast %103 : vector<2x32xf32> to vector<1x2x32xf32>
    tpu.vector_store %arg7[%c0_92, %c0_93, %c736], %109 {strides = array<i32>} : memref<1x4x1024xf32, #tpu.memory_space<vmem>>, vector<1x2x32xf32>,
    %c0_94 = arith.constant 0 : index
    %c192_95 = arith.constant 192 : index
    %110 = vector.load %arg8[%c0_94, %c192_95] : memref<2x256xf32, #tpu.memory_space<vmem>>, vector<2x16xf32>
    %cst_96 = arith.constant dense<0.000000e+00> : vector<2x32xf32>
    %111 = tpu.matmul %110, %13, %cst_96 {dimension_numbers = #tpu.dot_dimension_numbers<[1], [0], [0], [1], [0, 0, 1, 1], [], []>} : vector<2x16xf32>, vector<16x32xf32>, vector<2x32xf32> -> vector<2x32xf32>
    %c0_97 = arith.constant 0 : index
    %c0_98 = arith.constant 0 : index
    %c768 = arith.constant 768 : index
    %112 = vector.load %arg7[%c0_97, %c0_98, %c768] : memref<1x4x1024xf32, #tpu.memory_space<vmem>>, vector<1x2x32xf32>
    %113 = vector.shape_cast %112 : vector<1x2x32xf32> to vector<2x32xf32>
    %114 = vector.shape_cast %111 : vector<2x32xf32> to vector<1x2x32xf32>
    tpu.vector_store %arg7[%c0_97, %c0_98, %c768], %114 {strides = array<i32>} : memref<1x4x1024xf32, #tpu.memory_space<vmem>>, vector<1x2x32xf32>,
    %c0_99 = arith.constant 0 : index
    %c0_100 = arith.constant 0 : index
    %c800 = arith.constant 800 : index
    %115 = vector.load %arg7[%c0_99, %c0_100, %c800] : memref<1x4x1024xf32, #tpu.memory_space<vmem>>, vector<1x2x32xf32>
    %116 = vector.shape_cast %115 : vector<1x2x32xf32> to vector<2x32xf32>
    %117 = vector.shape_cast %111 : vector<2x32xf32> to vector<1x2x32xf32>
    tpu.vector_store %arg7[%c0_99, %c0_100, %c800], %117 {strides = array<i32>} : memref<1x4x1024xf32, #tpu.memory_space<vmem>>, vector<1x2x32xf32>,
    %c0_101 = arith.constant 0 : index
    %c208 = arith.constant 208 : index
    %118 = vector.load %arg8[%c0_101, %c208] : memref<2x256xf32, #tpu.memory_space<vmem>>, vector<2x16xf32>
    %cst_102 = arith.constant dense<0.000000e+00> : vector<2x32xf32>
    %119 = tpu.matmul %118, %13, %cst_102 {dimension_numbers = #tpu.dot_dimension_numbers<[1], [0], [0], [1], [0, 0, 1, 1], [], []>} : vector<2x16xf32>, vector<16x32xf32>, vector<2x32xf32> -> vector<2x32xf32>
    %c0_103 = arith.constant 0 : index
    %c0_104 = arith.constant 0 : index
    %c832 = arith.constant 832 : index
    %120 = vector.load %arg7[%c0_103, %c0_104, %c832] : memref<1x4x1024xf32, #tpu.memory_space<vmem>>, vector<1x2x32xf32>
    %121 = vector.shape_cast %120 : vector<1x2x32xf32> to vector<2x32xf32>
    %122 = vector.shape_cast %119 : vector<2x32xf32> to vector<1x2x32xf32>
    tpu.vector_store %arg7[%c0_103, %c0_104, %c832], %122 {strides = array<i32>} : memref<1x4x1024xf32, #tpu.memory_space<vmem>>, vector<1x2x32xf32>,
    %c0_105 = arith.constant 0 : index
    %c0_106 = arith.constant 0 : index
    %c864 = arith.constant 864 : index
    %123 = vector.load %arg7[%c0_105, %c0_106, %c864] : memref<1x4x1024xf32, #tpu.memory_space<vmem>>, vector<1x2x32xf32>
    %124 = vector.shape_cast %123 : vector<1x2x32xf32> to vector<2x32xf32>
    %125 = vector.shape_cast %119 : vector<2x32xf32> to vector<1x2x32xf32>
    tpu.vector_store %arg7[%c0_105, %c0_106, %c864], %125 {strides = array<i32>} : memref<1x4x1024xf32, #tpu.memory_space<vmem>>, vector<1x2x32xf32>,
    %c0_107 = arith.constant 0 : index
    %c224_108 = arith.constant 224 : index
    %126 = vector.load %arg8[%c0_107, %c224_108] : memref<2x256xf32, #tpu.memory_space<vmem>>, vector<2x16xf32>
    %cst_109 = arith.constant dense<0.000000e+00> : vector<2x32xf32>
    %127 = tpu.matmul %126, %13, %cst_109 {dimension_numbers = #tpu.dot_dimension_numbers<[1], [0], [0], [1], [0, 0, 1, 1], [], []>} : vector<2x16xf32>, vector<16x32xf32>, vector<2x32xf32> -> vector<2x32xf32>
    %c0_110 = arith.constant 0 : index
    %c0_111 = arith.constant 0 : index
    %c896 = arith.constant 896 : index
    %128 = vector.load %arg7[%c0_110, %c0_111, %c896] : memref<1x4x1024xf32, #tpu.memory_space<vmem>>, vector<1x2x32xf32>
    %129 = vector.shape_cast %128 : vector<1x2x32xf32> to vector<2x32xf32>
    %130 = vector.shape_cast %127 : vector<2x32xf32> to vector<1x2x32xf32>
    tpu.vector_store %arg7[%c0_110, %c0_111, %c896], %130 {strides = array<i32>} : memref<1x4x1024xf32, #tpu.memory_space<vmem>>, vector<1x2x32xf32>,
    %c0_112 = arith.constant 0 : index
    %c0_113 = arith.constant 0 : index
    %c928 = arith.constant 928 : index
    %131 = vector.load %arg7[%c0_112, %c0_113, %c928] : memref<1x4x1024xf32, #tpu.memory_space<vmem>>, vector<1x2x32xf32>
    %132 = vector.shape_cast %131 : vector<1x2x32xf32> to vector<2x32xf32>
    %133 = vector.shape_cast %127 : vector<2x32xf32> to vector<1x2x32xf32>
    tpu.vector_store %arg7[%c0_112, %c0_113, %c928], %133 {strides = array<i32>} : memref<1x4x1024xf32, #tpu.memory_space<vmem>>, vector<1x2x32xf32>,
    %c0_114 = arith.constant 0 : index
    %c240 = arith.constant 240 : index
    %134 = vector.load %arg8[%c0_114, %c240] : memref<2x256xf32, #tpu.memory_space<vmem>>, vector<2x16xf32>
    %cst_115 = arith.constant dense<0.000000e+00> : vector<2x32xf32>
    %135 = tpu.matmul %134, %13, %cst_115 {dimension_numbers = #tpu.dot_dimension_numbers<[1], [0], [0], [1], [0, 0, 1, 1], [], []>} : vector<2x16xf32>, vector<16x32xf32>, vector<2x32xf32> -> vector<2x32xf32>
    %c0_116 = arith.constant 0 : index
    %c0_117 = arith.constant 0 : index
    %c960 = arith.constant 960 : index
    %136 = vector.load %arg7[%c0_116, %c0_117, %c960] : memref<1x4x1024xf32, #tpu.memory_space<vmem>>, vector<1x2x32xf32>
    %137 = vector.shape_cast %136 : vector<1x2x32xf32> to vector<2x32xf32>
    %138 = vector.shape_cast %135 : vector<2x32xf32> to vector<1x2x32xf32>
    tpu.vector_store %arg7[%c0_116, %c0_117, %c960], %138 {strides = array<i32>} : memref<1x4x1024xf32, #tpu.memory_space<vmem>>, vector<1x2x32xf32>,
    %c0_118 = arith.constant 0 : index
    %c0_119 = arith.constant 0 : index
    %c992 = arith.constant 992 : index
    %139 = vector.load %arg7[%c0_118, %c0_119, %c992] : memref<1x4x1024xf32, #tpu.memory_space<vmem>>, vector<1x2x32xf32>
    %140 = vector.shape_cast %139 : vector<1x2x32xf32> to vector<2x32xf32>
    %141 = vector.shape_cast %135 : vector<2x32xf32> to vector<1x2x32xf32>
    tpu.vector_store %arg7[%c0_118, %c0_119, %c992], %141 {strides = array<i32>} : memref<1x4x1024xf32, #tpu.memory_space<vmem>>, vector<1x2x32xf32>,
    return
  }
  func.func @transform_0(%arg0: i32, %arg1: i32) -> (i32, i32) {
    %c0_i32 = arith.constant 0 : i32
    %c0_i32_0 = arith.constant 0 : i32
    %c0_i32_1 = arith.constant 0 : i32
    return %c0_i32, %c0_i32_0 : i32, i32
  }
  func.func @transform_1(%arg0: i32, %arg1: i32) -> (i32, i32) {
    %c0_i32 = arith.constant 0 : i32
    %c0_i32_0 = arith.constant 0 : i32
    %c0_i32_1 = arith.constant 0 : i32
    return %c0_i32, %c0_i32_0 : i32, i32
  }
  func.func @transform_2(%arg0: i32, %arg1: i32) -> (i32, i32) {
    %c0_i32 = arith.constant 0 : i32
    %c0_i32_0 = arith.constant 0 : i32
    %c0_i32_1 = arith.constant 0 : i32
    return %c0_i32, %c0_i32_0 : i32, i32
  }
  func.func @transform_3(%arg0: i32, %arg1: i32) -> (i32, i32, i32) {
    %c0_i32 = arith.constant 0 : i32
    %c0_i32_0 = arith.constant 0 : i32
    return %arg0, %c0_i32, %arg1 : i32, i32, i32
  }
  func.func @transform_4(%arg0: i32, %arg1: i32) -> (i32, i32, i32) {
    %c0_i32 = arith.constant 0 : i32
    %c0_i32_0 = arith.constant 0 : i32
    return %arg0, %c0_i32, %arg1 : i32, i32, i32
  }
  func.func @transform_5(%arg0: i32, %arg1: i32) -> (i32, i32, i32) {
    %c0_i32 = arith.constant 0 : i32
    %c0_i32_0 = arith.constant 0 : i32
    return %arg0, %c0_i32, %arg1 : i32, i32, i32
  }
}

</mosaic_0001>

<llo_original>
// kernel: upsample_forward.1
$region0: #{upsample_forward.1}
  #allocation0 [shape = 'u32[]', space=smem, size = 0x4, offset = 0x4, fixed_abs, tag = 'smem constant byte address 0x4 - core index']
  #allocation1 [shape = 'u32[72,128]{1,0:T(1,128)}', space=vmem, size = 0x9000, scoped, tag = 'internal scratch']
  #allocation2 [shape = 'f32[2,256]{1,0:T(2,128)}', space=vmem, size = 0x800, scoped, tag = 'scratch operand']
  %s0 = inlined_call_operand.vmem [shape: f32[2,4], index: 0, kind: input, shape index: {}]
  %s1 = inlined_call_operand.vmem [shape: f32[2,1], index: 1, kind: input, shape index: {}]
  %s2 = inlined_call_operand.vmem [shape: f32[16,32], index: 2, kind: input, shape index: {}]
  %s3 = inlined_call_operand.vmem [shape: f32[2,4,256], index: 3, kind: input, shape index: {}]
  %s4 = inlined_call_operand.vmem [shape: f32[2,2,1024], index: 4, kind: input, shape index: {}]
  %s5 = inlined_call_operand.vmem [shape: f32[2,4,1024], index: 5, kind: output, shape index: {}]
  %s6 = sld [smem:[#allocation0]]
  $region53: #{upsample_forward.1} parent=0
    _
  %s8 = ssub.s32 1, %s6
  %s9 = scalar_select 0, %s8, %s6
  loop: start=0, step=1, limit=4
  $region2: #{upsample_forward.1} parent=0 // loop_pre_header
    _
  $region3: #{upsample_forward.1} parent=0 // loop_header
    %s11 = sphi 0, %s15
    %p12 = scmp.ge.s32.totalorder %s11, 4
    %s18 = sphi 0, %s30
    %s19 = sphi 0, %s26
    %s20 = sphi 0, %s18
    %s21 = sphi 0, %s19
    %s22 = sphi 0, %s20
    %s23 = sphi 0, %s21
    %s31 = sphi 0, %s31
    %s33 = sphi 0, %s31
    %s34 = sphi 0, %s33
    %s48 = sphi 0, %s34
    %s52 = sphi 0, %s52
    %s54 = sphi 0, %s52
    %s55 = sphi 0, %s54
    %s69 = sphi 0, %s55
    %s73 = sphi 0, %s73
    %s75 = sphi 0, %s73
    %s76 = sphi 0, %s75
    %s90 = sphi 0, %s76
    %s98 = sphi 0, %s100
    %s101 = sphi 0, %s98
    %s102 = sphi 0, %s101
    %s118 = sphi 0, %s102
    %s126 = sphi 0, %s128
    %s129 = sphi 0, %s126
    %s130 = sphi 0, %s129
    %s146 = sphi 0, %s130
    %s154 = sphi 0, %s156
    %s157 = sphi 0, %s154
    %s158 = sphi 0, %s157
    %s174 = sphi 0, %s158
  $region4: #{upsample_forward.1} parent=0 // loop_header_branch
    %14 = sbr.rel (%p12) target = $region8
  $region5: #{upsample_forward.1} parent=0 // loop_body
    %s16 = ssub.s32 %s11, 1
    %s17 = ssub.s32 %s11, 2
    %s24 = sadd.s32 1, %s19
    %p25 = scmp.ge.s32.totalorder %s24, 1
    %s26 = scalar_select %p25, 0, %s24
    %s27 = sadd.s32 1, %s18
    %s28 = scalar_select %p25, %s27, %s18
    %p29 = scmp.ge.s32.totalorder %s28, 2
    %s30 = scalar_select %p29, 0, %s28
    %s32 = sadd.s32 %s31, 1
    %p35 = scmp.eq.s32.totalorder %s11, 1
    %p36 = scmp.ne.s32.totalorder %s31, %s33
    %p37 = scmp.eq.s32.totalorder %s11, 0
    %p38 = por %p36, %p37
    %p39 = scmp.ne.s32.totalorder %s31, %s33
    %p40 = scmp.eq.s32.totalorder %s16, 1
    %p41 = por %p39, %p40
    %p42 = scmp.ne.s32.totalorder %s33, %s34
    %p43 = scmp.eq.s32.totalorder %s16, 0
    %p44 = por %p42, %p43
    %p45 = scmp.ne.s32.totalorder %s33, %s34
    %p46 = scmp.eq.s32.totalorder %s17, 1
    %p47 = por %p45, %p46
    %p49 = scmp.ne.s32.totalorder %s34, %s48
    %p50 = scmp.eq.s32.totalorder %s17, 0
    %p51 = por %p49, %p50
    %s53 = sadd.s32 %s52, 1
    %p56 = scmp.eq.s32.totalorder %s11, 1
    %p57 = scmp.ne.s32.totalorder %s52, %s54
    %p58 = scmp.eq.s32.totalorder %s11, 0
    %p59 = por %p57, %p58
    %p60 = scmp.ne.s32.totalorder %s52, %s54
    %p61 = scmp.eq.s32.totalorder %s16, 1
    %p62 = por %p60, %p61
    %p63 = scmp.ne.s32.totalorder %s54, %s55
    %p64 = scmp.eq.s32.totalorder %s16, 0
    %p65 = por %p63, %p64
    %p66 = scmp.ne.s32.totalorder %s54, %s55
    %p67 = scmp.eq.s32.totalorder %s17, 1
    %p68 = por %p66, %p67
    %p70 = scmp.ne.s32.totalorder %s55, %s69
    %p71 = scmp.eq.s32.totalorder %s17, 0
    %p72 = por %p70, %p71
    %s74 = sadd.s32 %s73, 1
    %p77 = scmp.eq.s32.totalorder %s11, 1
    %p78 = scmp.ne.s32.totalorder %s73, %s75
    %p79 = scmp.eq.s32.totalorder %s11, 0
    %p80 = por %p78, %p79
    %p81 = scmp.ne.s32.totalorder %s73, %s75
    %p82 = scmp.eq.s32.totalorder %s16, 1
    %p83 = por %p81, %p82
    %p84 = scmp.ne.s32.totalorder %s75, %s76
    %p85 = scmp.eq.s32.totalorder %s16, 0
    %p86 = por %p84, %p85
    %p87 = scmp.ne.s32.totalorder %s75, %s76
    %p88 = scmp.eq.s32.totalorder %s17, 1
    %p89 = por %p87, %p88
    %p91 = scmp.ne.s32.totalorder %s76, %s90
    %p92 = scmp.eq.s32.totalorder %s17, 0
    %p93 = por %p91, %p92
    %s94 = ssub.s32 %s18, %s30
    %s95 = ssub.s32 %s19, %s26
    %s96 = sor.u32 %s94, %s95
    %p97 = scmp.eq.s32.totalorder %s96, 0
    %s99 = sadd.s32 %s98, 1
    %s100 = scalar_select %p97, %s98, %s99
    %p103 = pneg %p97
    %p104 = scmp.eq.s32.totalorder %s11, 1
    %p105 = por %p103, %p104
    %p106 = scmp.ne.s32.totalorder %s98, %s101
    %p107 = scmp.eq.s32.totalorder %s11, 0
    %p108 = por %p106, %p107
    %p109 = scmp.ne.s32.totalorder %s98, %s101
    %p110 = scmp.eq.s32.totalorder %s16, 1
    %p111 = por %p109, %p110
    %p112 = scmp.ne.s32.totalorder %s101, %s102
    %p113 = scmp.eq.s32.totalorder %s16, 0
    %p114 = por %p112, %p113
    %p115 = scmp.ne.s32.totalorder %s101, %s102
    %p116 = scmp.eq.s32.totalorder %s17, 1
    %p117 = por %p115, %p116
    %p119 = scmp.ne.s32.totalorder %s102, %s118
    %p120 = scmp.eq.s32.totalorder %s17, 0
    %p121 = por %p119, %p120
    %s122 = ssub.s32 %s18, %s30
    %s123 = ssub.s32 %s19, %s26
    %s124 = sor.u32 %s122, %s123
    %p125 = scmp.eq.s32.totalorder %s124, 0
    %s127 = sadd.s32 %s126, 1
    %s128 = scalar_select %p125, %s126, %s127
    %p131 = pneg %p125
    %p132 = scmp.eq.s32.totalorder %s11, 1
    %p133 = por %p131, %p132
    %p134 = scmp.ne.s32.totalorder %s126, %s129
    %p135 = scmp.eq.s32.totalorder %s11, 0
    %p136 = por %p134, %p135
    %p137 = scmp.ne.s32.totalorder %s126, %s129
    %p138 = scmp.eq.s32.totalorder %s16, 1
    %p139 = por %p137, %p138
    %p140 = scmp.ne.s32.totalorder %s129, %s130
    %p141 = scmp.eq.s32.totalorder %s16, 0
    %p142 = por %p140, %p141
    %p143 = scmp.ne.s32.totalorder %s129, %s130
    %p144 = scmp.eq.s32.totalorder %s17, 1
    %p145 = por %p143, %p144
    %p147 = scmp.ne.s32.totalorder %s130, %s146
    %p148 = scmp.eq.s32.totalorder %s17, 0
    %p149 = por %p147, %p148
    %s150 = ssub.s32 %s18, %s30
    %s151 = ssub.s32 %s19, %s26
    %s152 = sor.u32 %s150, %s151
    %p153 = scmp.eq.s32.totalorder %s152, 0
    %s155 = sadd.s32 %s154, 1
    %s156 = scalar_select %p153, %s154, %s155
    %p159 = pneg %p153
    %p160 = scmp.eq.s32.totalorder %s11, 1
    %p161 = por %p159, %p160
    %p162 = scmp.ne.s32.totalorder %s154, %s157
    %p163 = scmp.eq.s32.totalorder %s11, 0
    %p164 = por %p162, %p163
    %p165 = scmp.ne.s32.totalorder %s154, %s157
    %p166 = scmp.eq.s32.totalorder %s16, 1
    %p167 = por %p165, %p166
    %p168 = scmp.ne.s32.totalorder %s157, %s158
    %p169 = scmp.eq.s32.totalorder %s16, 0
    %p170 = por %p168, %p169
    %p171 = scmp.ne.s32.totalorder %s157, %s158
    %p172 = scmp.eq.s32.totalorder %s17, 1
    %p173 = por %p171, %p172
    %p175 = scmp.ne.s32.totalorder %s158, %s174
    %p176 = scmp.eq.s32.totalorder %s17, 0
    %p177 = por %p175, %p176
    %p178 = scmp.le.s32.totalorder 1, %s11
    %p179 = scmp.lt.s32.totalorder %s11, 3
    %p180 = pnand %p178, %p179
    %p181 = pneg %p180
    // Predicated region
    $region9: #{upsample_forward.1} parent=5 // pred_check
      _
    $region10: #{upsample_forward.1} parent=5 // pred_check_branch
      %183 = sbr.rel (%p180) target = $region12
    $region11: #{upsample_forward.1} parent=5 // pred_region
      %s184 = ssub.s32 %s11, 1
      // Predicated region
      $region13: #{upsample_forward.1} parent=11 // pred_check
        %p185 = pneg %p44
      $region14: #{upsample_forward.1} parent=11 // pred_check_branch
        %187 = sbr.rel (%p185) target = $region16
      $region15: #{upsample_forward.1} parent=11 // pred_region
        _
      $region16: #{upsample_forward.1} parent=11 // pred_fallthru
        _
      // Predicated region
      $region17: #{upsample_forward.1} parent=11 // pred_check
        %p188 = pneg %p65
      $region18: #{upsample_forward.1} parent=11 // pred_check_branch
        %190 = sbr.rel (%p188) target = $region20
      $region19: #{upsample_forward.1} parent=11 // pred_region
        _
      $region20: #{upsample_forward.1} parent=11 // pred_fallthru
        _
      // Predicated region
      $region21: #{upsample_forward.1} parent=11 // pred_check
        %p191 = pneg %p86
      $region22: #{upsample_forward.1} parent=11 // pred_check_branch
        %193 = sbr.rel (%p191) target = $region24
      $region23: #{upsample_forward.1} parent=11 // pred_region
        _
      $region24: #{upsample_forward.1} parent=11 // pred_fallthru
        _
    $region12: #{upsample_forward.1} parent=5 // pred_fallthru
      _
    %p194 = scmp.lt.s32.totalorder %s11, 2
    // Predicated region
    $region25: #{upsample_forward.1} parent=5 // pred_check
      %p195 = pneg %p194
    $region26: #{upsample_forward.1} parent=5 // pred_check_branch
      %197 = sbr.rel (%p195) target = $region28
    $region27: #{upsample_forward.1} parent=5 // pred_region
      // Predicated region
      $region29: #{upsample_forward.1} parent=27 // pred_check
        %p198 = pneg %p108
      $region30: #{upsample_forward.1} parent=27 // pred_check_branch
        %200 = sbr.rel (%p198) target = $region32
      $region31: #{upsample_forward.1} parent=27 // pred_region
        %s201 = smul.u32 2, %s19
        %p202 = scmp.lt.s32.totalorder %s18, 1
        %s203 = scalar_select %p202, %s18, 1
        %p204 = scmp.lt.s32.totalorder %s201, 1
        %s205 = scalar_select %p204, %s201, 1
        %s206 = smul.addr %s203, 2
        %s207 = sadd.s32 %s205, %s206
        %s208 = smul.addr %s207, 4
        %s209 = scalar_lea.vmem %s3, %s208
        %s210 = smul.u32 2, %s19
      $region32: #{upsample_forward.1} parent=27 // pred_fallthru
        _
      // Predicated region
      $region33: #{upsample_forward.1} parent=27 // pred_check
        %p211 = pneg %p136
      $region34: #{upsample_forward.1} parent=27 // pred_check_branch
        %213 = sbr.rel (%p211) target = $region36
      $region35: #{upsample_forward.1} parent=27 // pred_region
        %s214 = smul.u32 8, %s19
        %p215 = scmp.lt.s32.totalorder %s18, 1
        %s216 = scalar_select %p215, %s18, 1
        %p217 = scmp.lt.s32.totalorder %s214, 7
        %s218 = scalar_select %p217, %s214, 7
        %s219 = smul.addr %s216, 8
        %s220 = sadd.s32 %s218, %s219
        %s221 = smul.addr %s220, 2
        %s222 = scalar_lea.vmem %s4, %s221
        %s223 = smul.u32 8, %s19
      $region36: #{upsample_forward.1} parent=27 // pred_fallthru
        _
    $region28: #{upsample_forward.1} parent=5 // pred_fallthru
      _
    %p224 = scmp.le.s32.totalorder 1, %s11
    %p225 = scmp.lt.s32.totalorder %s11, 3
    %p226 = pnand %p224, %p225
    %p227 = pneg %p226
    // Predicated region
    $region37: #{upsample_forward.1} parent=5 // pred_check
      _
    $region38: #{upsample_forward.1} parent=5 // pred_check_branch
      %229 = sbr.rel (%p226) target = $region40
    $region39: #{upsample_forward.1} parent=5 // pred_region
      %s230 = ssub.s32 %s11, 1
      %p231 = pneg %p44
      %p232 = pneg %p41
      %p233 = pneg %p65
      %p234 = pneg %p62
      %p235 = pneg %p86
      %p236 = pneg %p83
      %s237 = smul.u32 2, %s21
      %p238 = scmp.lt.s32.totalorder %s20, 1
      %s239 = scalar_select %p238, %s20, 1
      %p240 = scmp.lt.s32.totalorder %s237, 1
      %s241 = scalar_select %p240, %s237, 1
      %s242 = smul.addr %s239, 2
      %s243 = sadd.s32 %s241, %s242
      %s244 = smul.addr %s243, 4
      %s245 = scalar_lea.vmem %s3, %s244
      %p246 = pneg %p114
      %p247 = pneg %p111
      %s248 = smul.u32 8, %s21
      %p249 = scmp.lt.s32.totalorder %s20, 1
      %s250 = scalar_select %p249, %s20, 1
      %p251 = scmp.lt.s32.totalorder %s248, 7
      %s252 = scalar_select %p251, %s248, 7
      %s253 = smul.addr %s250, 8
      %s254 = sadd.s32 %s252, %s253
      %s255 = smul.addr %s254, 2
      %s256 = scalar_lea.vmem %s4, %s255
      %p257 = pneg %p142
      %p258 = pneg %p139
      %p259 = pneg %p170
      %p260 = pneg %p167
      %s261 = smul.u32 8, %s21
      %p262 = scmp.lt.s32.totalorder %s20, 1
      %s263 = scalar_select %p262, %s20, 1
      %p264 = scmp.lt.s32.totalorder %s261, 7
      %s265 = scalar_select %p264, %s261, 7
      %s266 = smul.addr %s263, 8
      %s267 = sadd.s32 %s265, %s266
      %s268 = smul.addr %s267, 4
      %s269 = scalar_lea.vmem %s5, %s268
      %s270 = smul.u32 2, %s21
      %p271 = scmp.lt.s32.totalorder %s20, 1
      %s272 = scalar_select %p271, %s20, 1
      %p273 = scmp.lt.s32.totalorder %s270, 1
      %s274 = scalar_select %p273, %s270, 1
      %s275 = smul.addr %s272, 2
      %s276 = sadd.s32 %s274, %s275
      %s277 = smul.addr %s276, 4
      %s278 = scalar_lea.vmem %s3, %s277
      %s279 = smul.u32 2, %s21
      %s280 = smul.u32 8, %s21
      %p281 = scmp.lt.s32.totalorder %s20, 1
      %s282 = scalar_select %p281, %s20, 1
      %p283 = scmp.lt.s32.totalorder %s280, 7
      %s284 = scalar_select %p283, %s280, 7
      %s285 = smul.addr %s282, 8
      %s286 = sadd.s32 %s284, %s285
      %s287 = smul.addr %s286, 2
      %s288 = scalar_lea.vmem %s4, %s287
      %s289 = smul.u32 8, %s21
      %s290 = smul.u32 8, %s21
      %p291 = scmp.lt.s32.totalorder %s20, 1
      %s292 = scalar_select %p291, %s20, 1
      %p293 = scmp.lt.s32.totalorder %s290, 7
      %s294 = scalar_select %p293, %s290, 7
      %s295 = smul.addr %s292, 8
      %s296 = sadd.s32 %s294, %s295
      %s297 = smul.addr %s296, 4
      %s298 = scalar_lea.vmem %s5, %s297
      %s299 = smul.u32 8, %s21
      %v300 = vld [vmem:[%s288] sm:$0xff]
      %v301 = vld [vmem:[%s288 + $0x8] sm:$0xff]
      %s304 = scalar_lea.vmem [#allocation1], 1
      %305 = vst [vmem:[%s304] ss:$2 sm:$0xff] %v300
      %s306 = scalar_lea.vmem [#allocation1], 17
      %307 = vst [vmem:[%s306] ss:$2 sm:$0xff] %v301
      %v308 = vld.sshfl [vmem:[#allocation1] sm:$0xff pattern:$0x75643120]
      %v309 = vld.sshfl [vmem:[#allocation1 + $0x8] sm:$0xff pattern:$0x75643120]
      %v310 = vld.sshfl [vmem:[#allocation1 + $0x10] sm:$0xff pattern:$0x75643120]
      %v311 = vld.sshfl [vmem:[#allocation1 + $0x18] sm:$0xff pattern:$0x75643120]
      %316 = vst [vmem:[%s298] sm:$0xcc] %v308
      %317 = vst [vmem:[%s298 + $0x8] sm:$0xcc] %v309
      %318 = vst [vmem:[%s298 + $0x10] sm:$0xcc] %v310
      %319 = vst [vmem:[%s298 + $0x18] sm:$0xcc] %v311
      %v320 = vld [vmem:[%s0] sm:$0x3]
      %v321 = vld [vmem:[%s278] sm:$0xff]
      %v322 = vld [vmem:[%s1] sm:$0x3]
      %324 = vset.pattern.permute.xlu0 0
      %325 = vperm.xlu0 %324, %v322
      %v326 = vpop.permute.xlu0 %325
      %329 = vst [vmem:[#allocation1] ss:$2 sm:$0xff] %v321
      %v330 = vld.sshfl [vmem:[#allocation1] sm:$0xff pattern:$0x75316420]
      %v331 = vld.sshfl [vmem:[#allocation1 + $0x8] sm:$0xff pattern:$0x75316420]
      %vm332 = vcmask 31744
      %v334 = vsel %vm332, %v320, 0
      %vm336 = vcmask 1043456
      %v337 = vsel %vm336, %v330, 0
      %v339 = vsel %vm336, %v331, 0
      %341 = vmatpush.msra.mxu0 0.0
      %342 = vmatpush.msra.mxu0 0.0
      %343 = vmatpush.msra.mxu0 0.0
      %344 = vmatpush.msra.mxu0 0.0
      %345 = vmatpush.msra.mxu0 0.0
      %346 = vmatpush.msra.mxu0 0.0
      %347 = vmatpush.msra.mxu0 0.0
      %348 = vmatpush.msra.mxu0 0.0
      %349 = vmatpush.msra.mxu0 0.0
      %350 = vmatpush.msra.mxu0 0.0
      %351 = vmatpush.msra.mxu0 0.0
      %352 = vmatpush.msra.mxu0 0.0
      %353 = vmatpush.msra.mxu0 0.0
      %354 = vmatpush.msra.mxu0 0.0
      %355 = vmatpush.msra.mxu0 0.0
      %356 = vmatpush.msra.mxu0 %v337
      %357 = vmatmul.f32.gmra.mxu0 %v334
      %v358 = vpop.f32.mrf.mxu0
      %v359 = vadd.f32 %v326, %v358
      %360 = vdwg.mxu0
      %361 = vmatpush.msra.mxu0 0.0
      %362 = vmatpush.msra.mxu0 0.0
      %363 = vmatpush.msra.mxu0 0.0
      %364 = vmatpush.msra.mxu0 0.0
      %365 = vmatpush.msra.mxu0 0.0
      %366 = vmatpush.msra.mxu0 0.0
      %367 = vmatpush.msra.mxu0 0.0
      %368 = vmatpush.msra.mxu0 0.0
      %369 = vmatpush.msra.mxu0 0.0
      %370 = vmatpush.msra.mxu0 0.0
      %371 = vmatpush.msra.mxu0 0.0
      %372 = vmatpush.msra.mxu0 0.0
      %373 = vmatpush.msra.mxu0 0.0
      %374 = vmatpush.msra.mxu0 0.0
      %375 = vmatpush.msra.mxu0 0.0
      %376 = vmatpush.msra.mxu0 %v339
      %377 = vmatmul.f32.gmra.mxu0 %v334
      %v378 = vpop.f32.mrf.mxu0
      %v379 = vadd.f32 %v326, %v378
      %380 = vdwg.mxu0
      %v383 = vrot.slane %v379, 6
      %vm384 = vcmask 1041408
      %v385 = vsel %vm384, %v359, %v383
      %387 = vst [vmem:[#allocation2] sm:$0xf] %v385
      %v388 = vld [vmem:[%s2] sm:$0xff]
      %v389 = vld [vmem:[%s2 + $0x8] sm:$0xff]
      %v390 = vld [vmem:[#allocation2] sm:$0x3]
      %vm391 = vcmask 130048
      %v393 = vsel %vm391, %v390, 0
      %395 = vmatpush.msra.mxu0 0.0
      %396 = vmatpush.msra.mxu0 0.0
      %397 = vmatpush.msra.mxu0 0.0
      %398 = vmatpush.msra.mxu0 0.0
      %399 = vmatpush.msra.mxu0 0.0
      %400 = vmatpush.msra.mxu0 0.0
      %401 = vmatpush.msra.mxu0 0.0
      %402 = vmatpush.msra.mxu0 0.0
      %403 = vmatpush.msra.mxu0 0.0
      %404 = vmatpush.msra.mxu0 0.0
      %405 = vmatpush.msra.mxu0 0.0
      %406 = vmatpush.msra.mxu0 0.0
      %407 = vmatpush.msra.mxu0 0.0
      %408 = vmatpush.msra.mxu0 0.0
      %409 = vmatpush.msra.mxu0 %v389
      %410 = vmatpush.msra.mxu0 %v388
      %411 = vmatmul.f32.gmra.mxu0 %v393
      %v412 = vpop.f32.mrf.mxu0
      %v413 = vadd.f32 0.0, %v412
      %414 = vdwg.mxu0
      %vm415 = vcmask 254976
      %416 = vst.msk [vmem:[%s298] sm:$0x3] %vm415, %v413
      %418 = vrot.lane.b32.xlu0 %v413, 32
      %v419 = vpop.permute.xlu0 %418
      %vm421 = vcmask 517376
      %422 = vst.msk [vmem:[%s298] sm:$0x3] %vm421, %v419
      %v423 = vld [vmem:[#allocation2] sm:$0x3]
      %425 = vst [vmem:[#allocation1] ss:$4 sm:$0xff] %v423
      %v426 = vld.sshfl [vmem:[#allocation1] sm:$0xff pattern:$0x73625140]
      %427 = vrot.lane.b32.xlu0 %v426, 112
      %v428 = vpop.permute.xlu0 %427
      %v429 = vsel %vm391, %v428, 0
      %431 = vmatpush.msra.mxu0 0.0
      %432 = vmatpush.msra.mxu0 0.0
      %433 = vmatpush.msra.mxu0 0.0
      %434 = vmatpush.msra.mxu0 0.0
      %435 = vmatpush.msra.mxu0 0.0
      %436 = vmatpush.msra.mxu0 0.0
      %437 = vmatpush.msra.mxu0 0.0
      %438 = vmatpush.msra.mxu0 0.0
      %439 = vmatpush.msra.mxu0 0.0
      %440 = vmatpush.msra.mxu0 0.0
      %441 = vmatpush.msra.mxu0 0.0
      %442 = vmatpush.msra.mxu0 0.0
      %443 = vmatpush.msra.mxu0 0.0
      %444 = vmatpush.msra.mxu0 0.0
      %445 = vmatpush.msra.mxu0 %v389
      %446 = vmatpush.msra.mxu0 %v388
      %447 = vmatmul.f32.gmra.mxu0 %v429
      %v448 = vpop.f32.mrf.mxu0
      %v449 = vadd.f32 0.0, %v448
      %450 = vdwg.mxu0
      %452 = vrot.lane.b32.xlu0 %v449, 64
      %v453 = vpop.permute.xlu0 %452
      %vm455 = vcmask 779776
      %456 = vst.msk [vmem:[%s298] sm:$0x3] %vm455, %v453
      %457 = vrot.lane.b32.xlu0 %v449, 96
      %v458 = vpop.permute.xlu0 %457
      %vm460 = vcmask 1042176
      %461 = vst.msk [vmem:[%s298] sm:$0x3] %vm460, %v458
      %v462 = vld [vmem:[#allocation2] sm:$0x3]
      %464 = vst [vmem:[#allocation1] ss:$4 sm:$0xff] %v462
      %v465 = vld.sshfl [vmem:[#allocation1] sm:$0xff pattern:$0x73625140]
      %466 = vrot.lane.b32.xlu0 %v465, 96
      %v467 = vpop.permute.xlu0 %466
      %v468 = vsel %vm391, %v467, 0
      %470 = vmatpush.msra.mxu0 0.0
      %471 = vmatpush.msra.mxu0 0.0
      %472 = vmatpush.msra.mxu0 0.0
      %473 = vmatpush.msra.mxu0 0.0
      %474 = vmatpush.msra.mxu0 0.0
      %475 = vmatpush.msra.mxu0 0.0
      %476 = vmatpush.msra.mxu0 0.0
      %477 = vmatpush.msra.mxu0 0.0
      %478 = vmatpush.msra.mxu0 0.0
      %479 = vmatpush.msra.mxu0 0.0
      %480 = vmatpush.msra.mxu0 0.0
      %481 = vmatpush.msra.mxu0 0.0
      %482 = vmatpush.msra.mxu0 0.0
      %483 = vmatpush.msra.mxu0 0.0
      %484 = vmatpush.msra.mxu0 %v389
      %485 = vmatpush.msra.mxu0 %v388
      %486 = vmatmul.f32.gmra.mxu0 %v468
      %v487 = vpop.f32.mrf.mxu0
      %v488 = vadd.f32 0.0, %v487
      %489 = vdwg.mxu0
      %490 = vst.msk [vmem:[%s298 + $0x4] sm:$0x3] %vm415, %v488
      %492 = vrot.lane.b32.xlu0 %v488, 32
      %v493 = vpop.permute.xlu0 %492
      %495 = vst.msk [vmem:[%s298 + $0x4] sm:$0x3] %vm421, %v493
      %v496 = vld [vmem:[#allocation2] sm:$0x3]
      %498 = vst [vmem:[#allocation1] ss:$4 sm:$0xff] %v496
      %v499 = vld.sshfl [vmem:[#allocation1] sm:$0xff pattern:$0x73625140]
      %500 = vrot.lane.b32.xlu0 %v499, 80
      %v501 = vpop.permute.xlu0 %500
      %v502 = vsel %vm391, %v501, 0
      %504 = vmatpush.msra.mxu0 0.0
      %505 = vmatpush.msra.mxu0 0.0
      %506 = vmatpush.msra.mxu0 0.0
      %507 = vmatpush.msra.mxu0 0.0
      %508 = vmatpush.msra.mxu0 0.0
      %509 = vmatpush.msra.mxu0 0.0
      %510 = vmatpush.msra.mxu0 0.0
      %511 = vmatpush.msra.mxu0 0.0
      %512 = vmatpush.msra.mxu0 0.0
      %513 = vmatpush.msra.mxu0 0.0
      %514 = vmatpush.msra.mxu0 0.0
      %515 = vmatpush.msra.mxu0 0.0
      %516 = vmatpush.msra.mxu0 0.0
      %517 = vmatpush.msra.mxu0 0.0
      %518 = vmatpush.msra.mxu0 %v389
      %519 = vmatpush.msra.mxu0 %v388
      %520 = vmatmul.f32.gmra.mxu0 %v502
      %v521 = vpop.f32.mrf.mxu0
      %v522 = vadd.f32 0.0, %v521
      %523 = vdwg.mxu0
      %525 = vrot.lane.b32.xlu0 %v522, 64
      %v526 = vpop.permute.xlu0 %525
      %528 = vst.msk [vmem:[%s298 + $0x4] sm:$0x3] %vm455, %v526
      %529 = vrot.lane.b32.xlu0 %v522, 96
      %v530 = vpop.permute.xlu0 %529
      %532 = vst.msk [vmem:[%s298 + $0x4] sm:$0x3] %vm460, %v530
      %v533 = vld [vmem:[#allocation2] sm:$0x3]
      %535 = vst [vmem:[#allocation1] ss:$4 sm:$0xff] %v533
      %v536 = vld.sshfl [vmem:[#allocation1] sm:$0xff pattern:$0x73625140]
      %537 = vrot.lane.b32.xlu0 %v536, 64
      %v538 = vpop.permute.xlu0 %537
      %v539 = vsel %vm391, %v538, 0
      %541 = vmatpush.msra.mxu0 0.0
      %542 = vmatpush.msra.mxu0 0.0
      %543 = vmatpush.msra.mxu0 0.0
      %544 = vmatpush.msra.mxu0 0.0
      %545 = vmatpush.msra.mxu0 0.0
      %546 = vmatpush.msra.mxu0 0.0
      %547 = vmatpush.msra.mxu0 0.0
      %548 = vmatpush.msra.mxu0 0.0
      %549 = vmatpush.msra.mxu0 0.0
      %550 = vmatpush.msra.mxu0 0.0
      %551 = vmatpush.msra.mxu0 0.0
      %552 = vmatpush.msra.mxu0 0.0
      %553 = vmatpush.msra.mxu0 0.0
      %554 = vmatpush.msra.mxu0 0.0
      %555 = vmatpush.msra.mxu0 %v389
      %556 = vmatpush.msra.mxu0 %v388
      %557 = vmatmul.f32.gmra.mxu0 %v539
      %v558 = vpop.f32.mrf.mxu0
      %v559 = vadd.f32 0.0, %v558
      %560 = vdwg.mxu0
      %561 = vst.msk [vmem:[%s298 + $0x8] sm:$0x3] %vm415, %v559
      %563 = vrot.lane.b32.xlu0 %v559, 32
      %v564 = vpop.permute.xlu0 %563
      %566 = vst.msk [vmem:[%s298 + $0x8] sm:$0x3] %vm421, %v564
      %v567 = vld [vmem:[#allocation2] sm:$0x3]
      %569 = vst [vmem:[#allocation1] ss:$4 sm:$0xff] %v567
      %v570 = vld.sshfl [vmem:[#allocation1] sm:$0xff pattern:$0x73625140]
      %571 = vrot.lane.b32.xlu0 %v570, 48
      %v572 = vpop.permute.xlu0 %571
      %v573 = vsel %vm391, %v572, 0
      %575 = vmatpush.msra.mxu0 0.0
      %576 = vmatpush.msra.mxu0 0.0
      %577 = vmatpush.msra.mxu0 0.0
      %578 = vmatpush.msra.mxu0 0.0
      %579 = vmatpush.msra.mxu0 0.0
      %580 = vmatpush.msra.mxu0 0.0
      %581 = vmatpush.msra.mxu0 0.0
      %582 = vmatpush.msra.mxu0 0.0
      %583 = vmatpush.msra.mxu0 0.0
      %584 = vmatpush.msra.mxu0 0.0
      %585 = vmatpush.msra.mxu0 0.0
      %586 = vmatpush.msra.mxu0 0.0
      %587 = vmatpush.msra.mxu0 0.0
      %588 = vmatpush.msra.mxu0 0.0
      %589 = vmatpush.msra.mxu0 %v389
      %590 = vmatpush.msra.mxu0 %v388
      %591 = vmatmul.f32.gmra.mxu0 %v573
      %v592 = vpop.f32.mrf.mxu0
      %v593 = vadd.f32 0.0, %v592
      %594 = vdwg.mxu0
      %596 = vrot.lane.b32.xlu0 %v593, 64
      %v597 = vpop.permute.xlu0 %596
      %599 = vst.msk [vmem:[%s298 + $0x8] sm:$0x3] %vm455, %v597
      %600 = vrot.lane.b32.xlu0 %v593, 96
      %v601 = vpop.permute.xlu0 %600
      %603 = vst.msk [vmem:[%s298 + $0x8] sm:$0x3] %vm460, %v601
      %v604 = vld [vmem:[#allocation2] sm:$0x3]
      %606 = vst [vmem:[#allocation1] ss:$4 sm:$0xff] %v604
      %v607 = vld.sshfl [vmem:[#allocation1] sm:$0xff pattern:$0x73625140]
      %608 = vrot.lane.b32.xlu0 %v607, 32
      %v609 = vpop.permute.xlu0 %608
      %v610 = vsel %vm391, %v609, 0
      %612 = vmatpush.msra.mxu0 0.0
      %613 = vmatpush.msra.mxu0 0.0
      %614 = vmatpush.msra.mxu0 0.0
      %615 = vmatpush.msra.mxu0 0.0
      %616 = vmatpush.msra.mxu0 0.0
      %617 = vmatpush.msra.mxu0 0.0
      %618 = vmatpush.msra.mxu0 0.0
      %619 = vmatpush.msra.mxu0 0.0
      %620 = vmatpush.msra.mxu0 0.0
      %621 = vmatpush.msra.mxu0 0.0
      %622 = vmatpush.msra.mxu0 0.0
      %623 = vmatpush.msra.mxu0 0.0
      %624 = vmatpush.msra.mxu0 0.0
      %625 = vmatpush.msra.mxu0 0.0
      %626 = vmatpush.msra.mxu0 %v389
      %627 = vmatpush.msra.mxu0 %v388
      %628 = vmatmul.f32.gmra.mxu0 %v610
      %v629 = vpop.f32.mrf.mxu0
      %v630 = vadd.f32 0.0, %v629
      %631 = vdwg.mxu0
      %632 = vst.msk [vmem:[%s298 + $0xc] sm:$0x3] %vm415, %v630
      %634 = vrot.lane.b32.xlu0 %v630, 32
      %v635 = vpop.permute.xlu0 %634
      %637 = vst.msk [vmem:[%s298 + $0xc] sm:$0x3] %vm421, %v635
      %v638 = vld [vmem:[#allocation2] sm:$0x3]
      %640 = vst [vmem:[#allocation1] ss:$4 sm:$0xff] %v638
      %v641 = vld.sshfl [vmem:[#allocation1] sm:$0xff pattern:$0x73625140]
      %642 = vrot.lane.b32.xlu0 %v641, 16
      %v643 = vpop.permute.xlu0 %642
      %v644 = vsel %vm391, %v643, 0
      %646 = vmatpush.msra.mxu0 0.0
      %647 = vmatpush.msra.mxu0 0.0
      %648 = vmatpush.msra.mxu0 0.0
      %649 = vmatpush.msra.mxu0 0.0
      %650 = vmatpush.msra.mxu0 0.0
      %651 = vmatpush.msra.mxu0 0.0
      %652 = vmatpush.msra.mxu0 0.0
      %653 = vmatpush.msra.mxu0 0.0
      %654 = vmatpush.msra.mxu0 0.0
      %655 = vmatpush.msra.mxu0 0.0
      %656 = vmatpush.msra.mxu0 0.0
      %657 = vmatpush.msra.mxu0 0.0
      %658 = vmatpush.msra.mxu0 0.0
      %659 = vmatpush.msra.mxu0 0.0
      %660 = vmatpush.msra.mxu0 %v389
      %661 = vmatpush.msra.mxu0 %v388
      %662 = vmatmul.f32.gmra.mxu0 %v644
      %v663 = vpop.f32.mrf.mxu0
      %v664 = vadd.f32 0.0, %v663
      %665 = vdwg.mxu0
      %667 = vrot.lane.b32.xlu0 %v664, 64
      %v668 = vpop.permute.xlu0 %667
      %670 = vst.msk [vmem:[%s298 + $0xc] sm:$0x3] %vm455, %v668
      %671 = vrot.lane.b32.xlu0 %v664, 96
      %v672 = vpop.permute.xlu0 %671
      %674 = vst.msk [vmem:[%s298 + $0xc] sm:$0x3] %vm460, %v672
      %v675 = vld [vmem:[#allocation2 + $0x2] sm:$0x3]
      %v677 = vsel %vm391, %v675, 0
      %679 = vmatpush.msra.mxu0 0.0
      %680 = vmatpush.msra.mxu0 0.0
      %681 = vmatpush.msra.mxu0 0.0
      %682 = vmatpush.msra.mxu0 0.0
      %683 = vmatpush.msra.mxu0 0.0
      %684 = vmatpush.msra.mxu0 0.0
      %685 = vmatpush.msra.mxu0 0.0
      %686 = vmatpush.msra.mxu0 0.0
      %687 = vmatpush.msra.mxu0 0.0
      %688 = vmatpush.msra.mxu0 0.0
      %689 = vmatpush.msra.mxu0 0.0
      %690 = vmatpush.msra.mxu0 0.0
      %691 = vmatpush.msra.mxu0 0.0
      %692 = vmatpush.msra.mxu0 0.0
      %693 = vmatpush.msra.mxu0 %v389
      %694 = vmatpush.msra.mxu0 %v388
      %695 = vmatmul.f32.gmra.mxu0 %v677
      %v696 = vpop.f32.mrf.mxu0
      %v697 = vadd.f32 0.0, %v696
      %698 = vdwg.mxu0
      %699 = vst.msk [vmem:[%s298 + $0x10] sm:$0x3] %vm415, %v697
      %701 = vrot.lane.b32.xlu0 %v697, 32
      %v702 = vpop.permute.xlu0 %701
      %704 = vst.msk [vmem:[%s298 + $0x10] sm:$0x3] %vm421, %v702
      %v705 = vld [vmem:[#allocation2 + $0x2] sm:$0x3]
      %707 = vst [vmem:[#allocation1] ss:$4 sm:$0xff] %v705
      %v708 = vld.sshfl [vmem:[#allocation1] sm:$0xff pattern:$0x73625140]
      %709 = vrot.lane.b32.xlu0 %v708, 112
      %v710 = vpop.permute.xlu0 %709
      %v711 = vsel %vm391, %v710, 0
      %713 = vmatpush.msra.mxu0 0.0
      %714 = vmatpush.msra.mxu0 0.0
      %715 = vmatpush.msra.mxu0 0.0
      %716 = vmatpush.msra.mxu0 0.0
      %717 = vmatpush.msra.mxu0 0.0
      %718 = vmatpush.msra.mxu0 0.0
      %719 = vmatpush.msra.mxu0 0.0
      %720 = vmatpush.msra.mxu0 0.0
      %721 = vmatpush.msra.mxu0 0.0
      %722 = vmatpush.msra.mxu0 0.0
      %723 = vmatpush.msra.mxu0 0.0
      %724 = vmatpush.msra.mxu0 0.0
      %725 = vmatpush.msra.mxu0 0.0
      %726 = vmatpush.msra.mxu0 0.0
      %727 = vmatpush.msra.mxu0 %v389
      %728 = vmatpush.msra.mxu0 %v388
      %729 = vmatmul.f32.gmra.mxu0 %v711
      %v730 = vpop.f32.mrf.mxu0
      %v731 = vadd.f32 0.0, %v730
      %732 = vdwg.mxu0
      %734 = vrot.lane.b32.xlu0 %v731, 64
      %v735 = vpop.permute.xlu0 %734
      %737 = vst.msk [vmem:[%s298 + $0x10] sm:$0x3] %vm455, %v735
      %738 = vrot.lane.b32.xlu0 %v731, 96
      %v739 = vpop.permute.xlu0 %738
      %741 = vst.msk [vmem:[%s298 + $0x10] sm:$0x3] %vm460, %v739
      %v742 = vld [vmem:[#allocation2 + $0x2] sm:$0x3]
      %744 = vst [vmem:[#allocation1] ss:$4 sm:$0xff] %v742
      %v745 = vld.sshfl [vmem:[#allocation1] sm:$0xff pattern:$0x73625140]
      %746 = vrot.lane.b32.xlu0 %v745, 96
      %v747 = vpop.permute.xlu0 %746
      %v748 = vsel %vm391, %v747, 0
      %750 = vmatpush.msra.mxu0 0.0
      %751 = vmatpush.msra.mxu0 0.0
      %752 = vmatpush.msra.mxu0 0.0
      %753 = vmatpush.msra.mxu0 0.0
      %754 = vmatpush.msra.mxu0 0.0
      %755 = vmatpush.msra.mxu0 0.0
      %756 = vmatpush.msra.mxu0 0.0
      %757 = vmatpush.msra.mxu0 0.0
      %758 = vmatpush.msra.mxu0 0.0
      %759 = vmatpush.msra.mxu0 0.0
      %760 = vmatpush.msra.mxu0 0.0
      %761 = vmatpush.msra.mxu0 0.0
      %762 = vmatpush.msra.mxu0 0.0
      %763 = vmatpush.msra.mxu0 0.0
      %764 = vmatpush.msra.mxu0 %v389
      %765 = vmatpush.msra.mxu0 %v388
      %766 = vmatmul.f32.gmra.mxu0 %v748
      %v767 = vpop.f32.mrf.mxu0
      %v768 = vadd.f32 0.0, %v767
      %769 = vdwg.mxu0
      %770 = vst.msk [vmem:[%s298 + $0x14] sm:$0x3] %vm415, %v768
      %772 = vrot.lane.b32.xlu0 %v768, 32
      %v773 = vpop.permute.xlu0 %772
      %775 = vst.msk [vmem:[%s298 + $0x14] sm:$0x3] %vm421, %v773
      %v776 = vld [vmem:[#allocation2 + $0x2] sm:$0x3]
      %778 = vst [vmem:[#allocation1] ss:$4 sm:$0xff] %v776
      %v779 = vld.sshfl [vmem:[#allocation1] sm:$0xff pattern:$0x73625140]
      %780 = vrot.lane.b32.xlu0 %v779, 80
      %v781 = vpop.permute.xlu0 %780
      %v782 = vsel %vm391, %v781, 0
      %784 = vmatpush.msra.mxu0 0.0
      %785 = vmatpush.msra.mxu0 0.0
      %786 = vmatpush.msra.mxu0 0.0
      %787 = vmatpush.msra.mxu0 0.0
      %788 = vmatpush.msra.mxu0 0.0
      %789 = vmatpush.msra.mxu0 0.0
      %790 = vmatpush.msra.mxu0 0.0
      %791 = vmatpush.msra.mxu0 0.0
      %792 = vmatpush.msra.mxu0 0.0
      %793 = vmatpush.msra.mxu0 0.0
      %794 = vmatpush.msra.mxu0 0.0
      %795 = vmatpush.msra.mxu0 0.0
      %796 = vmatpush.msra.mxu0 0.0
      %797 = vmatpush.msra.mxu0 0.0
      %798 = vmatpush.msra.mxu0 %v389
      %799 = vmatpush.msra.mxu0 %v388
      %800 = vmatmul.f32.gmra.mxu0 %v782
      %v801 = vpop.f32.mrf.mxu0
      %v802 = vadd.f32 0.0, %v801
      %803 = vdwg.mxu0
      %805 = vrot.lane.b32.xlu0 %v802, 64
      %v806 = vpop.permute.xlu0 %805
      %808 = vst.msk [vmem:[%s298 + $0x14] sm:$0x3] %vm455, %v806
      %809 = vrot.lane.b32.xlu0 %v802, 96
      %v810 = vpop.permute.xlu0 %809
      %812 = vst.msk [vmem:[%s298 + $0x14] sm:$0x3] %vm460, %v810
      %v813 = vld [vmem:[#allocation2 + $0x2] sm:$0x3]
      %815 = vst [vmem:[#allocation1] ss:$4 sm:$0xff] %v813
      %v816 = vld.sshfl [vmem:[#allocation1] sm:$0xff pattern:$0x73625140]
      %817 = vrot.lane.b32.xlu0 %v816, 64
      %v818 = vpop.permute.xlu0 %817
      %v819 = vsel %vm391, %v818, 0
      %821 = vmatpush.msra.mxu0 0.0
      %822 = vmatpush.msra.mxu0 0.0
      %823 = vmatpush.msra.mxu0 0.0
      %824 = vmatpush.msra.mxu0 0.0
      %825 = vmatpush.msra.mxu0 0.0
      %826 = vmatpush.msra.mxu0 0.0
      %827 = vmatpush.msra.mxu0 0.0
      %828 = vmatpush.msra.mxu0 0.0
      %829 = vmatpush.msra.mxu0 0.0
      %830 = vmatpush.msra.mxu0 0.0
      %831 = vmatpush.msra.mxu0 0.0
      %832 = vmatpush.msra.mxu0 0.0
      %833 = vmatpush.msra.mxu0 0.0
      %834 = vmatpush.msra.mxu0 0.0
      %835 = vmatpush.msra.mxu0 %v389
      %836 = vmatpush.msra.mxu0 %v388
      %837 = vmatmul.f32.gmra.mxu0 %v819
      %v838 = vpop.f32.mrf.mxu0
      %v839 = vadd.f32 0.0, %v838
      %840 = vdwg.mxu0
      %841 = vst.msk [vmem:[%s298 + $0x18] sm:$0x3] %vm415, %v839
      %843 = vrot.lane.b32.xlu0 %v839, 32
      %v844 = vpop.permute.xlu0 %843
      %846 = vst.msk [vmem:[%s298 + $0x18] sm:$0x3] %vm421, %v844
      %v847 = vld [vmem:[#allocation2 + $0x2] sm:$0x3]
      %849 = vst [vmem:[#allocation1] ss:$4 sm:$0xff] %v847
      %v850 = vld.sshfl [vmem:[#allocation1] sm:$0xff pattern:$0x73625140]
      %851 = vrot.lane.b32.xlu0 %v850, 48
      %v852 = vpop.permute.xlu0 %851
      %v853 = vsel %vm391, %v852, 0
      %855 = vmatpush.msra.mxu0 0.0
      %856 = vmatpush.msra.mxu0 0.0
      %857 = vmatpush.msra.mxu0 0.0
      %858 = vmatpush.msra.mxu0 0.0
      %859 = vmatpush.msra.mxu0 0.0
      %860 = vmatpush.msra.mxu0 0.0
      %861 = vmatpush.msra.mxu0 0.0
      %862 = vmatpush.msra.mxu0 0.0
      %863 = vmatpush.msra.mxu0 0.0
      %864 = vmatpush.msra.mxu0 0.0
      %865 = vmatpush.msra.mxu0 0.0
      %866 = vmatpush.msra.mxu0 0.0
      %867 = vmatpush.msra.mxu0 0.0
      %868 = vmatpush.msra.mxu0 0.0
      %869 = vmatpush.msra.mxu0 %v389
      %870 = vmatpush.msra.mxu0 %v388
      %871 = vmatmul.f32.gmra.mxu0 %v853
      %v872 = vpop.f32.mrf.mxu0
      %v873 = vadd.f32 0.0, %v872
      %874 = vdwg.mxu0
      %876 = vrot.lane.b32.xlu0 %v873, 64
      %v877 = vpop.permute.xlu0 %876
      %879 = vst.msk [vmem:[%s298 + $0x18] sm:$0x3] %vm455, %v877
      %880 = vrot.lane.b32.xlu0 %v873, 96
      %v881 = vpop.permute.xlu0 %880
      %883 = vst.msk [vmem:[%s298 + $0x18] sm:$0x3] %vm460, %v881
      %v884 = vld [vmem:[#allocation2 + $0x2] sm:$0x3]
      %886 = vst [vmem:[#allocation1] ss:$4 sm:$0xff] %v884
      %v887 = vld.sshfl [vmem:[#allocation1] sm:$0xff pattern:$0x73625140]
      %888 = vrot.lane.b32.xlu0 %v887, 32
      %v889 = vpop.permute.xlu0 %888
      %v890 = vsel %vm391, %v889, 0
      %892 = vmatpush.msra.mxu0 0.0
      %893 = vmatpush.msra.mxu0 0.0
      %894 = vmatpush.msra.mxu0 0.0
      %895 = vmatpush.msra.mxu0 0.0
      %896 = vmatpush.msra.mxu0 0.0
      %897 = vmatpush.msra.mxu0 0.0
      %898 = vmatpush.msra.mxu0 0.0
      %899 = vmatpush.msra.mxu0 0.0
      %900 = vmatpush.msra.mxu0 0.0
      %901 = vmatpush.msra.mxu0 0.0
      %902 = vmatpush.msra.mxu0 0.0
      %903 = vmatpush.msra.mxu0 0.0
      %904 = vmatpush.msra.mxu0 0.0
      %905 = vmatpush.msra.mxu0 0.0
      %906 = vmatpush.msra.mxu0 %v389
      %907 = vmatpush.msra.mxu0 %v388
      %908 = vmatmul.f32.gmra.mxu0 %v890
      %v909 = vpop.f32.mrf.mxu0
      %v910 = vadd.f32 0.0, %v909
      %911 = vdwg.mxu0
      %912 = vst.msk [vmem:[%s298 + $0x1c] sm:$0x3] %vm415, %v910
      %914 = vrot.lane.b32.xlu0 %v910, 32
      %v915 = vpop.permute.xlu0 %914
      %917 = vst.msk [vmem:[%s298 + $0x1c] sm:$0x3] %vm421, %v915
      %v918 = vld [vmem:[#allocation2 + $0x2] sm:$0x3]
      %920 = vst [vmem:[#allocation1] ss:$4 sm:$0xff] %v918
      %v921 = vld.sshfl [vmem:[#allocation1] sm:$0xff pattern:$0x73625140]
      %922 = vrot.lane.b32.xlu0 %v921, 16
      %v923 = vpop.permute.xlu0 %922
      %v924 = vsel %vm391, %v923, 0
      %926 = vmatpush.msra.mxu0 0.0
      %927 = vmatpush.msra.mxu0 0.0
      %928 = vmatpush.msra.mxu0 0.0
      %929 = vmatpush.msra.mxu0 0.0
      %930 = vmatpush.msra.mxu0 0.0
      %931 = vmatpush.msra.mxu0 0.0
      %932 = vmatpush.msra.mxu0 0.0
      %933 = vmatpush.msra.mxu0 0.0
      %934 = vmatpush.msra.mxu0 0.0
      %935 = vmatpush.msra.mxu0 0.0
      %936 = vmatpush.msra.mxu0 0.0
      %937 = vmatpush.msra.mxu0 0.0
      %938 = vmatpush.msra.mxu0 0.0
      %939 = vmatpush.msra.mxu0 0.0
      %940 = vmatpush.msra.mxu0 %v389
      %941 = vmatpush.msra.mxu0 %v388
      %942 = vmatmul.f32.gmra.mxu0 %v924
      %v943 = vpop.f32.mrf.mxu0
      %v944 = vadd.f32 0.0, %v943
      %945 = vdwg.mxu0
      %947 = vrot.lane.b32.xlu0 %v944, 64
      %v948 = vpop.permute.xlu0 %947
      %950 = vst.msk [vmem:[%s298 + $0x1c] sm:$0x3] %vm455, %v948
      %951 = vrot.lane.b32.xlu0 %v944, 96
      %v952 = vpop.permute.xlu0 %951
      %954 = vst.msk [vmem:[%s298 + $0x1c] sm:$0x3] %vm460, %v952
      %s955 = smul.u32 8, %s21
      %p956 = scmp.lt.s32.totalorder %s20, 1
      %s957 = scalar_select %p956, %s20, 1
      %p958 = scmp.lt.s32.totalorder %s955, 7
      %s959 = scalar_select %p958, %s955, 7
      %s960 = smul.addr %s957, 8
      %s961 = sadd.s32 %s959, %s960
      %s962 = smul.addr %s961, 4
      %s963 = scalar_lea.vmem %s5, %s962
      // Predicated region
      $region41: #{upsample_forward.1} parent=39 // pred_check
        %p964 = pneg %p167
      $region42: #{upsample_forward.1} parent=39 // pred_check_branch
        %966 = sbr.rel (%p964) target = $region44
      $region43: #{upsample_forward.1} parent=39 // pred_region
        %s967 = smul.u32 8, %s21
      $region44: #{upsample_forward.1} parent=39 // pred_fallthru
        _
    $region40: #{upsample_forward.1} parent=5 // pred_fallthru
      _
    %p968 = scmp.le.s32.totalorder 2, %s11
    // Predicated region
    $region45: #{upsample_forward.1} parent=5 // pred_check
      %p969 = pneg %p968
    $region46: #{upsample_forward.1} parent=5 // pred_check_branch
      %971 = sbr.rel (%p969) target = $region48
    $region47: #{upsample_forward.1} parent=5 // pred_region
      %s972 = ssub.s32 %s11, 2
      // Predicated region
      $region49: #{upsample_forward.1} parent=47 // pred_check
        %p973 = pneg %p173
      $region50: #{upsample_forward.1} parent=47 // pred_check_branch
        %975 = sbr.rel (%p973) target = $region52
      $region51: #{upsample_forward.1} parent=47 // pred_region
        %s976 = smul.u32 8, %s23
        %p977 = scmp.lt.s32.totalorder %s22, 1
        %s978 = scalar_select %p977, %s22, 1
        %p979 = scmp.lt.s32.totalorder %s976, 7
        %s980 = scalar_select %p979, %s976, 7
        %s981 = smul.addr %s978, 8
        %s982 = sadd.s32 %s980, %s981
        %s983 = smul.addr %s982, 4
        %s984 = scalar_lea.vmem %s5, %s983
      $region52: #{upsample_forward.1} parent=47 // pred_fallthru
        _
    $region48: #{upsample_forward.1} parent=5 // pred_fallthru
      _
  $region6: #{upsample_forward.1} parent=0 // loop_footer
    %s15 = sadd.s32 1, %s11
  $region7: #{upsample_forward.1} parent=0 // loop_footer_branch
    %10 = sbr.rel target = $region3
  $region8: #{upsample_forward.1} parent=0 // loop_exit
    _

</llo_original>
